<compile_context>
chip_gen: v5e
topology: v5e:2x2
jax: 0.10.0
libtpu: 0.0.40
codegen_flags: <defaults>
</compile_context>

<pallas_src>
import functools

import numpy as np
import jax
import jax.numpy as jnp
from jax import lax
from jax.experimental import pallas as pl
from jax.experimental.pallas import tpu as pltpu

INPUT_SIZE = 1
HIDDEN_SIZE = 50
NUM_LAYERS = 2

H_PAD = 64                    # hidden size padded to sublane/lane friendly size
G = 4 * H_PAD                 # fused gate width (256 lanes = 2 x 128)
_GATE_PERM = (0, 1, 3, 2)     # torch (i, f, g, o) -> kernel (i, f, o, g)


def _round_up(n, m):
    return ((n + m - 1) // m) * m


def _fuse_gate_weight(w, in_pad):
    """(4, in_dim, H) per-gate weights (torch gate order, pre-transposed so x @ w[g]
    is correct) -> (in_pad, 4*H_PAD) fused, gate-reordered, zero-padded."""
    in_dim = w.shape[1]
    w = w[jnp.array(_GATE_PERM)]
    w = jnp.pad(w, ((0, 0), (0, in_pad - in_dim), (0, H_PAD - HIDDEN_SIZE)))
    return jnp.transpose(w, (1, 0, 2)).reshape(in_pad, G)


def _fuse_gate_bias(b):
    """(4, 1, H) -> (1, 4*H_PAD) fused, gate-reordered, zero-padded."""
    b = b[jnp.array(_GATE_PERM)]
    b = jnp.pad(b, ((0, 0), (0, 0), (0, H_PAD - HIDDEN_SIZE)))
    return jnp.transpose(b, (1, 0, 2)).reshape(1, G)


def pack_params(params):
    """One-time weight packing: fuse/reorder/pad gates and fold the 0.5 sigmoid->tanh
    rescale into the i/f/o columns so the kernel needs only tanh on the EUP."""
    scale = jnp.concatenate(
        [jnp.full((3 * H_PAD,), 0.5, jnp.float32),
         jnp.ones((H_PAD,), jnp.float32)]).reshape(1, G)
    wih0 = _fuse_gate_weight(params["wih0"], 1) * scale            # (1, G)
    b0 = _fuse_gate_bias(params["b0"]) * scale                     # (1, G)
    w0h = _fuse_gate_weight(params["whh0"], H_PAD) * scale         # (H_PAD, G)
    w1ih = _fuse_gate_weight(params["wih1"], H_PAD) * scale        # (H_PAD, G)
    w1hh = _fuse_gate_weight(params["whh1"], H_PAD) * scale        # (H_PAD, G)
    b1 = _fuse_gate_bias(params["b1"]) * scale                     # (1, G)
    wfc = jnp.zeros((H_PAD, 128), jnp.float32).at[:HIDDEN_SIZE, 0].set(params["wfc"][0])
    bfc = jnp.zeros((1, 128), jnp.float32).at[0, 0].set(params["bfc"][0, 0])
    return {"wih0": wih0, "b0": b0, "w0h": w0h, "w1ih": w1ih,
            "w1hh": w1hh, "b1": b1, "wfc": wfc, "bfc": bfc}


def _lstm_fc_kernel(T, x_ref, wih0_ref, b0_ref, w0h_ref, w1ih_ref, w1hh_ref,
                    b1_ref, wfc_ref, bfc_ref, out_ref, xw0_ref):
    # x_ref : (BB, T_pad)     one batch block, time in lanes
    # wih0  : (1, G)          layer-0 input weights (input_size == 1), fused gates
    # b0/b1 : (1, G)          fused biases (b_ih + b_hh), gate-reordered, pre-scaled
    # w0h   : (H_PAD, G)      layer-0 recurrent weights
    # w1ih  : (H_PAD, G)      layer-1 input-path weights
    # w1hh  : (H_PAD, G)      layer-1 recurrent weights
    # wfc   : (H_PAD, 128)    fc weight in column 0, zero elsewhere
    # bfc   : (1, 128)        fc bias in lane 0
    # out   : (BB, 128)       result in lane 0
    # xw0   : (T, BB, G)      VMEM scratch: hoisted layer-0 input pre-activations
    f32 = jnp.float32
    Hp = H_PAD

    x = x_ref[...]
    wih0 = wih0_ref[...]
    b0 = b0_ref[...]

    # Hoist the layer-0 input term (no dependence on h) off the recurrent chain.
    for t in range(T):
        xw0_ref[t] = x[:, t:t + 1] * wih0 + b0

    w0h = w0h_ref[...]
    w1ih = w1ih_ref[...]
    w1hh = w1hh_ref[...]
    b1 = b1_ref[...]

    def cell(pre, c):
        # i/f/o columns were pre-scaled by 0.5, so ONE tanh over the full G-lane slab
        # covers both the sigmoid gates (0.5*tanh+0.5) and the candidate gate.
        act = jnp.tanh(pre)
        i_g = 0.5 * act[:, :Hp] + 0.5
        f_g = 0.5 * act[:, Hp:2 * Hp] + 0.5
        o_g = 0.5 * act[:, 2 * Hp:3 * Hp] + 0.5
        g = act[:, 3 * Hp:]
        c_new = f_g * c + i_g * g
        h_new = o_g * jnp.tanh(c_new)
        return h_new, c_new

    zeros = jnp.zeros((x.shape[0], Hp), f32)

    def step(t, carry):
        h0, c0, h1, c1 = carry
        # layer 0: recurrent matmul + hoisted input term
        pre0 = jnp.dot(h0, w0h, preferred_element_type=f32) + xw0_ref[t]
        h0n, c0n = cell(pre0, c0)
        # layer 1: recurrent term depends only on h1(t-1) -> can issue early;
        # input term uses the fresh h0n.
        pre1 = (jnp.dot(h1, w1hh, preferred_element_type=f32)
                + jnp.dot(h0n, w1ih, preferred_element_type=f32) + b1)
        h1n, c1n = cell(pre1, c1)
        return h0n, c0n, h1n, c1n

    carry = (zeros, zeros, zeros, zeros)
    if T <= 16:
        # small static window: full unroll lets adjacent steps interleave
        for t in range(T):
            carry = step(t, carry)
        h0, c0, h1, c1 = carry
    else:
        # long windows: shallow-unrolled loop bounds code size / vreg live ranges
        h0, c0, h1, c1 = lax.fori_loop(0, T, step, carry, unroll=4)

    # fc: folded into one lane-dense MXU matmul (real result lives in lane 0)
    out = jnp.dot(h1, wfc_ref[...], preferred_element_type=f32) + bfc_ref[...]
    out_ref[...] = out.astype(out_ref.dtype)


def bitcoin_lstm_forward(x, packed):
    """x: (B, T, INPUT_SIZE) float32, packed = pack_params(...) -> (B, 1) float32."""
    B, T, _ = x.shape
    B_pad = _round_up(max(B, 8), 8)
    if B_pad <= 32:
        BB = B_pad                      # one block (already small)
    else:
        BB = 32                         # >= 2 blocks -> shards across TCs on v7x
        B_pad = _round_up(B_pad, BB)
    T_pad = _round_up(max(T, 128), 128)

    # lane-dense x slab: (B_pad, T_pad), time in lanes; padded region never read
    x2 = jnp.pad(jnp.squeeze(x, -1).astype(jnp.float32),
                 ((0, B_pad - B), (0, T_pad - T)))

    kernel = functools.partial(_lstm_fc_kernel, T)
    out = pl.pallas_call(
        kernel,
        out_shape=jax.ShapeDtypeStruct((B_pad, 128), jnp.float32),
        grid_spec=pltpu.PrefetchScalarGridSpec(
            num_scalar_prefetch=0,
            grid=(B_pad // BB,),
            in_specs=[
                pl.BlockSpec((BB, T_pad), lambda i: (i, 0)),
                pl.BlockSpec((1, G), lambda i: (0, 0)),
                pl.BlockSpec((1, G), lambda i: (0, 0)),
                pl.BlockSpec((H_PAD, G), lambda i: (0, 0)),
                pl.BlockSpec((H_PAD, G), lambda i: (0, 0)),
                pl.BlockSpec((H_PAD, G), lambda i: (0, 0)),
                pl.BlockSpec((1, G), lambda i: (0, 0)),
                pl.BlockSpec((H_PAD, 128), lambda i: (0, 0)),
                pl.BlockSpec((1, 128), lambda i: (0, 0)),
            ],
            out_specs=pl.BlockSpec((BB, 128), lambda i: (i, 0)),
            scratch_shapes=[pltpu.VMEM((T, BB, G), jnp.float32)],
        ),
        compiler_params=pltpu.CompilerParams(
            dimension_semantics=("parallel",)),   # batch blocks shard across TCs (v7x)
    )(x2, packed["wih0"], packed["b0"], packed["w0h"], packed["w1ih"],
      packed["w1hh"], packed["b1"], packed["wfc"], packed["bfc"])
    return out[:B, 0:1]


def init_params(key):
    """Deterministic init mimicking nn.LSTM / nn.Linear uniform(-1/sqrt(H), 1/sqrt(H)),
    stored in torch gate order (i, f, g, o) with weights pre-transposed per gate."""
    H = HIDDEN_SIZE
    bound = 1.0 / np.sqrt(H)
    keys = jax.random.split(key, 10)

    def u(kk, shape):
        return jax.random.uniform(kk, shape, jnp.float32, -bound, bound)

    return {
        # layer 0 (input_size -> H)
        "wih0": u(keys[0], (4, INPUT_SIZE, H)),
        "whh0": u(keys[1], (4, H, H)),
        "b0":   u(keys[2], (4, 1, H)) + u(keys[3], (4, 1, H)),   # b_ih + b_hh
        # layer 1 (H -> H)
        "wih1": u(keys[4], (4, H, H)),
        "whh1": u(keys[5], (4, H, H)),
        "b1":   u(keys[6], (4, 1, H)) + u(keys[7], (4, 1, H)),
        # fc (H -> 1), torch layout (out_features, in_features)
        "wfc":  u(keys[8], (1, H)),
        "bfc":  u(keys[9], (1, 1)),
    }


def reference_forward(x, p):
    """Pure-JAX reference with identical math (for verification)."""
    B, T, _ = x.shape

    def cell(xw, h, c, whh, b):
        i = jax.nn.sigmoid(xw[0] + h @ whh[0] + b[0])
        f = jax.nn.sigmoid(xw[1] + h @ whh[1] + b[1])
        g = jnp.tanh(xw[2] + h @ whh[2] + b[2])
        o = jax.nn.sigmoid(xw[3] + h @ whh[3] + b[3])
        c = f * c + i * g
        return o * jnp.tanh(c), c

    h0 = c0 = h1 = c1 = jnp.zeros((B, HIDDEN_SIZE), jnp.float32)
    for t in range(T):
        x_t = x[:, t, :]
        xw0 = tuple(x_t @ p["wih0"][g] for g in range(4))
        h0, c0 = cell(xw0, h0, c0, p["whh0"], p["b0"])
        xw1 = tuple(h0 @ p["wih1"][g] for g in range(4))
        h1, c1 = cell(xw1, h1, c1, p["whh1"], p["b1"])
    return jnp.sum(h1 * p["wfc"], axis=-1, keepdims=True) + p["bfc"]


if __name__ == "__main__":
    key = jax.random.PRNGKey(0)
    pkey, xkey = jax.random.split(key)
    params = init_params(pkey)
    packed = jax.tree_util.tree_map(jax.block_until_ready,
                                    pack_params(params))   # pack once, off hot path

    B, T = 2, 8
    x = jax.random.normal(xkey, (B, T, INPUT_SIZE), jnp.float32)

    out = bitcoin_lstm_forward(x, packed)
    out = jax.block_until_ready(out)

    ref = reference_forward(x, params)
    np.testing.assert_allclose(np.asarray(out), np.asarray(ref), rtol=1e-5, atol=1e-5)
    assert out.shape == (B, 1) and out.dtype == jnp.float32

    print("KERNEL_OK")
</pallas_src>

<mosaic_0001>
module attributes {stable_mosaic.version = 11 : i64} {
  func.func @_lstm_fc_kernel(%arg0: i32, %arg1: memref<8x128xf32, #tpu.memory_space<vmem>>, %arg2: memref<1x256xf32, #tpu.memory_space<vmem>>, %arg3: memref<1x256xf32, #tpu.memory_space<vmem>>, %arg4: memref<64x256xf32, #tpu.memory_space<vmem>>, %arg5: memref<64x256xf32, #tpu.memory_space<vmem>>, %arg6: memref<64x256xf32, #tpu.memory_space<vmem>>, %arg7: memref<1x256xf32, #tpu.memory_space<vmem>>, %arg8: memref<64x128xf32, #tpu.memory_space<vmem>>, %arg9: memref<1x128xf32, #tpu.memory_space<vmem>>, %arg10: memref<8x128xf32, #tpu.memory_space<vmem>>, %arg11: memref<8x8x256xf32, #tpu.memory_space<vmem>>) attributes {dimension_semantics = [#tpu.dimension_semantics<parallel>], iteration_bounds = array<i64: 1>, scalar_prefetch = 0 : i64, scratch_operands = 1 : i64, tpu.core_type = #tpu.core_type<tc>, window_params = [{transform_indices = @transform_0, window_bounds = array<i64: 8, 128>}, {pipeline_mode = #tpu.pipeline_mode<synchronous>, transform_indices = @transform_1, window_bounds = array<i64: 1, 256>}, {pipeline_mode = #tpu.pipeline_mode<synchronous>, transform_indices = @transform_2, window_bounds = array<i64: 1, 256>}, {pipeline_mode = #tpu.pipeline_mode<synchronous>, transform_indices = @transform_3, window_bounds = array<i64: 64, 256>}, {pipeline_mode = #tpu.pipeline_mode<synchronous>, transform_indices = @transform_4, window_bounds = array<i64: 64, 256>}, {pipeline_mode = #tpu.pipeline_mode<synchronous>, transform_indices = @transform_5, window_bounds = array<i64: 64, 256>}, {pipeline_mode = #tpu.pipeline_mode<synchronous>, transform_indices = @transform_6, window_bounds = array<i64: 1, 256>}, {pipeline_mode = #tpu.pipeline_mode<synchronous>, transform_indices = @transform_7, window_bounds = array<i64: 64, 128>}, {pipeline_mode = #tpu.pipeline_mode<synchronous>, transform_indices = @transform_8, window_bounds = array<i64: 1, 128>}, {transform_indices = @transform_9, window_bounds = array<i64: 8, 128>}]} {
    %c0 = arith.constant 0 : index
    %c0_0 = arith.constant 0 : index
    %0 = vector.load %arg1[%c0, %c0_0] : memref<8x128xf32, #tpu.memory_space<vmem>>, vector<8x128xf32>
    %c0_1 = arith.constant 0 : index
    %c0_2 = arith.constant 0 : index
    %1 = vector.load %arg2[%c0_1, %c0_2] : memref<1x256xf32, #tpu.memory_space<vmem>>, vector<1x256xf32>
    %c0_3 = arith.constant 0 : index
    %c0_4 = arith.constant 0 : index
    %2 = vector.load %arg3[%c0_3, %c0_4] : memref<1x256xf32, #tpu.memory_space<vmem>>, vector<1x256xf32>
    %3 = vector.extract_strided_slice %0 {offsets = [0, 0], sizes = [8, 1], strides = [1, 1]} : vector<8x128xf32> to vector<8x1xf32>
    %4 = vector.broadcast %3 : vector<8x1xf32> to vector<8x256xf32>
    %5 = vector.broadcast %1 : vector<1x256xf32> to vector<8x256xf32>
    %6 = arith.mulf %4, %5 : vector<8x256xf32>
    %7 = vector.broadcast %2 : vector<1x256xf32> to vector<8x256xf32>
    %8 = arith.addf %6, %7 : vector<8x256xf32>
    %c0_5 = arith.constant 0 : index
    %c0_6 = arith.constant 0 : index
    %c0_7 = arith.constant 0 : index
    %9 = vector.load %arg11[%c0_5, %c0_6, %c0_7] : memref<8x8x256xf32, #tpu.memory_space<vmem>>, vector<1x8x256xf32>
    %10 = vector.shape_cast %9 : vector<1x8x256xf32> to vector<8x256xf32>
    %11 = vector.shape_cast %8 : vector<8x256xf32> to vector<1x8x256xf32>
    tpu.vector_store %arg11[%c0_5, %c0_6, %c0_7], %11 {strides = array<i32>} : memref<8x8x256xf32, #tpu.memory_space<vmem>>, vector<1x8x256xf32>,
    %12 = vector.extract_strided_slice %0 {offsets = [0, 1], sizes = [8, 1], strides = [1, 1]} : vector<8x128xf32> to vector<8x1xf32>
    %13 = vector.broadcast %12 : vector<8x1xf32> to vector<8x256xf32>
    %14 = vector.broadcast %1 : vector<1x256xf32> to vector<8x256xf32>
    %15 = arith.mulf %13, %14 : vector<8x256xf32>
    %16 = vector.broadcast %2 : vector<1x256xf32> to vector<8x256xf32>
    %17 = arith.addf %15, %16 : vector<8x256xf32>
    %c1 = arith.constant 1 : index
    %c0_8 = arith.constant 0 : index
    %c0_9 = arith.constant 0 : index
    %18 = vector.load %arg11[%c1, %c0_8, %c0_9] : memref<8x8x256xf32, #tpu.memory_space<vmem>>, vector<1x8x256xf32>
    %19 = vector.shape_cast %18 : vector<1x8x256xf32> to vector<8x256xf32>
    %20 = vector.shape_cast %17 : vector<8x256xf32> to vector<1x8x256xf32>
    tpu.vector_store %arg11[%c1, %c0_8, %c0_9], %20 {strides = array<i32>} : memref<8x8x256xf32, #tpu.memory_space<vmem>>, vector<1x8x256xf32>,
    %21 = vector.extract_strided_slice %0 {offsets = [0, 2], sizes = [8, 1], strides = [1, 1]} : vector<8x128xf32> to vector<8x1xf32>
    %22 = vector.broadcast %21 : vector<8x1xf32> to vector<8x256xf32>
    %23 = vector.broadcast %1 : vector<1x256xf32> to vector<8x256xf32>
    %24 = arith.mulf %22, %23 : vector<8x256xf32>
    %25 = vector.broadcast %2 : vector<1x256xf32> to vector<8x256xf32>
    %26 = arith.addf %24, %25 : vector<8x256xf32>
    %c2 = arith.constant 2 : index
    %c0_10 = arith.constant 0 : index
    %c0_11 = arith.constant 0 : index
    %27 = vector.load %arg11[%c2, %c0_10, %c0_11] : memref<8x8x256xf32, #tpu.memory_space<vmem>>, vector<1x8x256xf32>
    %28 = vector.shape_cast %27 : vector<1x8x256xf32> to vector<8x256xf32>
    %29 = vector.shape_cast %26 : vector<8x256xf32> to vector<1x8x256xf32>
    tpu.vector_store %arg11[%c2, %c0_10, %c0_11], %29 {strides = array<i32>} : memref<8x8x256xf32, #tpu.memory_space<vmem>>, vector<1x8x256xf32>,
    %30 = vector.extract_strided_slice %0 {offsets = [0, 3], sizes = [8, 1], strides = [1, 1]} : vector<8x128xf32> to vector<8x1xf32>
    %31 = vector.broadcast %30 : vector<8x1xf32> to vector<8x256xf32>
    %32 = vector.broadcast %1 : vector<1x256xf32> to vector<8x256xf32>
    %33 = arith.mulf %31, %32 : vector<8x256xf32>
    %34 = vector.broadcast %2 : vector<1x256xf32> to vector<8x256xf32>
    %35 = arith.addf %33, %34 : vector<8x256xf32>
    %c3 = arith.constant 3 : index
    %c0_12 = arith.constant 0 : index
    %c0_13 = arith.constant 0 : index
    %36 = vector.load %arg11[%c3, %c0_12, %c0_13] : memref<8x8x256xf32, #tpu.memory_space<vmem>>, vector<1x8x256xf32>
    %37 = vector.shape_cast %36 : vector<1x8x256xf32> to vector<8x256xf32>
    %38 = vector.shape_cast %35 : vector<8x256xf32> to vector<1x8x256xf32>
    tpu.vector_store %arg11[%c3, %c0_12, %c0_13], %38 {strides = array<i32>} : memref<8x8x256xf32, #tpu.memory_space<vmem>>, vector<1x8x256xf32>,
    %39 = vector.extract_strided_slice %0 {offsets = [0, 4], sizes = [8, 1], strides = [1, 1]} : vector<8x128xf32> to vector<8x1xf32>
    %40 = vector.broadcast %39 : vector<8x1xf32> to vector<8x256xf32>
    %41 = vector.broadcast %1 : vector<1x256xf32> to vector<8x256xf32>
    %42 = arith.mulf %40, %41 : vector<8x256xf32>
    %43 = vector.broadcast %2 : vector<1x256xf32> to vector<8x256xf32>
    %44 = arith.addf %42, %43 : vector<8x256xf32>
    %c4 = arith.constant 4 : index
    %c0_14 = arith.constant 0 : index
    %c0_15 = arith.constant 0 : index
    %45 = vector.load %arg11[%c4, %c0_14, %c0_15] : memref<8x8x256xf32, #tpu.memory_space<vmem>>, vector<1x8x256xf32>
    %46 = vector.shape_cast %45 : vector<1x8x256xf32> to vector<8x256xf32>
    %47 = vector.shape_cast %44 : vector<8x256xf32> to vector<1x8x256xf32>
    tpu.vector_store %arg11[%c4, %c0_14, %c0_15], %47 {strides = array<i32>} : memref<8x8x256xf32, #tpu.memory_space<vmem>>, vector<1x8x256xf32>,
    %48 = vector.extract_strided_slice %0 {offsets = [0, 5], sizes = [8, 1], strides = [1, 1]} : vector<8x128xf32> to vector<8x1xf32>
    %49 = vector.broadcast %48 : vector<8x1xf32> to vector<8x256xf32>
    %50 = vector.broadcast %1 : vector<1x256xf32> to vector<8x256xf32>
    %51 = arith.mulf %49, %50 : vector<8x256xf32>
    %52 = vector.broadcast %2 : vector<1x256xf32> to vector<8x256xf32>
    %53 = arith.addf %51, %52 : vector<8x256xf32>
    %c5 = arith.constant 5 : index
    %c0_16 = arith.constant 0 : index
    %c0_17 = arith.constant 0 : index
    %54 = vector.load %arg11[%c5, %c0_16, %c0_17] : memref<8x8x256xf32, #tpu.memory_space<vmem>>, vector<1x8x256xf32>
    %55 = vector.shape_cast %54 : vector<1x8x256xf32> to vector<8x256xf32>
    %56 = vector.shape_cast %53 : vector<8x256xf32> to vector<1x8x256xf32>
    tpu.vector_store %arg11[%c5, %c0_16, %c0_17], %56 {strides = array<i32>} : memref<8x8x256xf32, #tpu.memory_space<vmem>>, vector<1x8x256xf32>,
    %57 = vector.extract_strided_slice %0 {offsets = [0, 6], sizes = [8, 1], strides = [1, 1]} : vector<8x128xf32> to vector<8x1xf32>
    %58 = vector.broadcast %57 : vector<8x1xf32> to vector<8x256xf32>
    %59 = vector.broadcast %1 : vector<1x256xf32> to vector<8x256xf32>
    %60 = arith.mulf %58, %59 : vector<8x256xf32>
    %61 = vector.broadcast %2 : vector<1x256xf32> to vector<8x256xf32>
    %62 = arith.addf %60, %61 : vector<8x256xf32>
    %c6 = arith.constant 6 : index
    %c0_18 = arith.constant 0 : index
    %c0_19 = arith.constant 0 : index
    %63 = vector.load %arg11[%c6, %c0_18, %c0_19] : memref<8x8x256xf32, #tpu.memory_space<vmem>>, vector<1x8x256xf32>
    %64 = vector.shape_cast %63 : vector<1x8x256xf32> to vector<8x256xf32>
    %65 = vector.shape_cast %62 : vector<8x256xf32> to vector<1x8x256xf32>
    tpu.vector_store %arg11[%c6, %c0_18, %c0_19], %65 {strides = array<i32>} : memref<8x8x256xf32, #tpu.memory_space<vmem>>, vector<1x8x256xf32>,
    %66 = vector.extract_strided_slice %0 {offsets = [0, 7], sizes = [8, 1], strides = [1, 1]} : vector<8x128xf32> to vector<8x1xf32>
    %67 = vector.broadcast %66 : vector<8x1xf32> to vector<8x256xf32>
    %68 = vector.broadcast %1 : vector<1x256xf32> to vector<8x256xf32>
    %69 = arith.mulf %67, %68 : vector<8x256xf32>
    %70 = vector.broadcast %2 : vector<1x256xf32> to vector<8x256xf32>
    %71 = arith.addf %69, %70 : vector<8x256xf32>
    %c7 = arith.constant 7 : index
    %c0_20 = arith.constant 0 : index
    %c0_21 = arith.constant 0 : index
    %72 = vector.load %arg11[%c7, %c0_20, %c0_21] : memref<8x8x256xf32, #tpu.memory_space<vmem>>, vector<1x8x256xf32>
    %73 = vector.shape_cast %72 : vector<1x8x256xf32> to vector<8x256xf32>
    %74 = vector.shape_cast %71 : vector<8x256xf32> to vector<1x8x256xf32>
    tpu.vector_store %arg11[%c7, %c0_20, %c0_21], %74 {strides = array<i32>} : memref<8x8x256xf32, #tpu.memory_space<vmem>>, vector<1x8x256xf32>,
    %c0_22 = arith.constant 0 : index
    %c0_23 = arith.constant 0 : index
    %75 = vector.load %arg4[%c0_22, %c0_23] : memref<64x256xf32, #tpu.memory_space<vmem>>, vector<64x256xf32>
    %c0_24 = arith.constant 0 : index
    %c0_25 = arith.constant 0 : index
    %76 = vector.load %arg5[%c0_24, %c0_25] : memref<64x256xf32, #tpu.memory_space<vmem>>, vector<64x256xf32>
    %c0_26 = arith.constant 0 : index
    %c0_27 = arith.constant 0 : index
    %77 = vector.load %arg6[%c0_26, %c0_27] : memref<64x256xf32, #tpu.memory_space<vmem>>, vector<64x256xf32>
    %c0_28 = arith.constant 0 : index
    %c0_29 = arith.constant 0 : index
    %78 = vector.load %arg7[%c0_28, %c0_29] : memref<1x256xf32, #tpu.memory_space<vmem>>, vector<1x256xf32>
    %cst = arith.constant 0.000000e+00 : f32
    %79 = vector.broadcast %cst : f32 to vector<8x64xf32>
    %cst_30 = arith.constant dense<0.000000e+00> : vector<8x256xf32>
    %80 = tpu.matmul %79, %75, %cst_30 {dimension_numbers = #tpu.dot_dimension_numbers<[1], [0], [0], [1], [0, 0, 1, 1], [], []>} : vector<8x64xf32>, vector<64x256xf32>, vector<8x256xf32> -> vector<8x256xf32>
    %c0_31 = arith.constant 0 : index
    %c0_32 = arith.constant 0 : index
    %c0_33 = arith.constant 0 : index
    %81 = vector.load %arg11[%c0_31, %c0_32, %c0_33] : memref<8x8x256xf32, #tpu.memory_space<vmem>>, vector<1x8x256xf32>
    %82 = vector.shape_cast %81 : vector<1x8x256xf32> to vector<8x256xf32>
    %83 = arith.addf %80, %82 : vector<8x256xf32>
    %84 = math.tanh %83 : vector<8x256xf32>
    %85 = vector.extract_strided_slice %84 {offsets = [0, 0], sizes = [8, 64], strides = [1, 1]} : vector<8x256xf32> to vector<8x64xf32>
    %cst_34 = arith.constant 5.000000e-01 : f32
    %86 = vector.broadcast %cst_34 : f32 to vector<8x64xf32>
    %87 = arith.mulf %86, %85 : vector<8x64xf32>
    %cst_35 = arith.constant 5.000000e-01 : f32
    %88 = vector.broadcast %cst_35 : f32 to vector<8x64xf32>
    %89 = arith.addf %87, %88 : vector<8x64xf32>
    %90 = vector.extract_strided_slice %84 {offsets = [0, 64], sizes = [8, 64], strides = [1, 1]} : vector<8x256xf32> to vector<8x64xf32>
    %cst_36 = arith.constant 5.000000e-01 : f32
    %91 = vector.broadcast %cst_36 : f32 to vector<8x64xf32>
    %92 = arith.mulf %91, %90 : vector<8x64xf32>
    %cst_37 = arith.constant 5.000000e-01 : f32
    %93 = vector.broadcast %cst_37 : f32 to vector<8x64xf32>
    %94 = arith.addf %92, %93 : vector<8x64xf32>
    %95 = vector.extract_strided_slice %84 {offsets = [0, 128], sizes = [8, 64], strides = [1, 1]} : vector<8x256xf32> to vector<8x64xf32>
    %cst_38 = arith.constant 5.000000e-01 : f32
    %96 = vector.broadcast %cst_38 : f32 to vector<8x64xf32>
    %97 = arith.mulf %96, %95 : vector<8x64xf32>
    %cst_39 = arith.constant 5.000000e-01 : f32
    %98 = vector.broadcast %cst_39 : f32 to vector<8x64xf32>
    %99 = arith.addf %97, %98 : vector<8x64xf32>
    %100 = vector.extract_strided_slice %84 {offsets = [0, 192], sizes = [8, 64], strides = [1, 1]} : vector<8x256xf32> to vector<8x64xf32>
    %101 = arith.mulf %94, %79 : vector<8x64xf32>
    %102 = arith.mulf %89, %100 : vector<8x64xf32>
    %103 = arith.addf %101, %102 : vector<8x64xf32>
    %104 = math.tanh %103 : vector<8x64xf32>
    %105 = arith.mulf %99, %104 : vector<8x64xf32>
    %cst_40 = arith.constant dense<0.000000e+00> : vector<8x256xf32>
    %106 = tpu.matmul %79, %77, %cst_40 {dimension_numbers = #tpu.dot_dimension_numbers<[1], [0], [0], [1], [0, 0, 1, 1], [], []>} : vector<8x64xf32>, vector<64x256xf32>, vector<8x256xf32> -> vector<8x256xf32>
    %cst_41 = arith.constant dense<0.000000e+00> : vector<8x256xf32>
    %107 = tpu.matmul %105, %76, %cst_41 {dimension_numbers = #tpu.dot_dimension_numbers<[1], [0], [0], [1], [0, 0, 1, 1], [], []>} : vector<8x64xf32>, vector<64x256xf32>, vector<8x256xf32> -> vector<8x256xf32>
    %108 = arith.addf %106, %107 : vector<8x256xf32>
    %109 = vector.broadcast %78 : vector<1x256xf32> to vector<8x256xf32>
    %110 = arith.addf %108, %109 : vector<8x256xf32>
    %111 = math.tanh %110 : vector<8x256xf32>
    %112 = vector.extract_strided_slice %111 {offsets = [0, 0], sizes = [8, 64], strides = [1, 1]} : vector<8x256xf32> to vector<8x64xf32>
    %cst_42 = arith.constant 5.000000e-01 : f32
    %113 = vector.broadcast %cst_42 : f32 to vector<8x64xf32>
    %114 = arith.mulf %113, %112 : vector<8x64xf32>
    %cst_43 = arith.constant 5.000000e-01 : f32
    %115 = vector.broadcast %cst_43 : f32 to vector<8x64xf32>
    %116 = arith.addf %114, %115 : vector<8x64xf32>
    %117 = vector.extract_strided_slice %111 {offsets = [0, 64], sizes = [8, 64], strides = [1, 1]} : vector<8x256xf32> to vector<8x64xf32>
    %cst_44 = arith.constant 5.000000e-01 : f32
    %118 = vector.broadcast %cst_44 : f32 to vector<8x64xf32>
    %119 = arith.mulf %118, %117 : vector<8x64xf32>
    %cst_45 = arith.constant 5.000000e-01 : f32
    %120 = vector.broadcast %cst_45 : f32 to vector<8x64xf32>
    %121 = arith.addf %119, %120 : vector<8x64xf32>
    %122 = vector.extract_strided_slice %111 {offsets = [0, 128], sizes = [8, 64], strides = [1, 1]} : vector<8x256xf32> to vector<8x64xf32>
    %cst_46 = arith.constant 5.000000e-01 : f32
    %123 = vector.broadcast %cst_46 : f32 to vector<8x64xf32>
    %124 = arith.mulf %123, %122 : vector<8x64xf32>
    %cst_47 = arith.constant 5.000000e-01 : f32
    %125 = vector.broadcast %cst_47 : f32 to vector<8x64xf32>
    %126 = arith.addf %124, %125 : vector<8x64xf32>
    %127 = vector.extract_strided_slice %111 {offsets = [0, 192], sizes = [8, 64], strides = [1, 1]} : vector<8x256xf32> to vector<8x64xf32>
    %128 = arith.mulf %121, %79 : vector<8x64xf32>
    %129 = arith.mulf %116, %127 : vector<8x64xf32>
    %130 = arith.addf %128, %129 : vector<8x64xf32>
    %131 = math.tanh %130 : vector<8x64xf32>
    %132 = arith.mulf %126, %131 : vector<8x64xf32>
    %cst_48 = arith.constant dense<0.000000e+00> : vector<8x256xf32>
    %133 = tpu.matmul %105, %75, %cst_48 {dimension_numbers = #tpu.dot_dimension_numbers<[1], [0], [0], [1], [0, 0, 1, 1], [], []>} : vector<8x64xf32>, vector<64x256xf32>, vector<8x256xf32> -> vector<8x256xf32>
    %c1_49 = arith.constant 1 : index
    %c0_50 = arith.constant 0 : index
    %c0_51 = arith.constant 0 : index
    %134 = vector.load %arg11[%c1_49, %c0_50, %c0_51] : memref<8x8x256xf32, #tpu.memory_space<vmem>>, vector<1x8x256xf32>
    %135 = vector.shape_cast %134 : vector<1x8x256xf32> to vector<8x256xf32>
    %136 = arith.addf %133, %135 : vector<8x256xf32>
    %137 = math.tanh %136 : vector<8x256xf32>
    %138 = vector.extract_strided_slice %137 {offsets = [0, 0], sizes = [8, 64], strides = [1, 1]} : vector<8x256xf32> to vector<8x64xf32>
    %cst_52 = arith.constant 5.000000e-01 : f32
    %139 = vector.broadcast %cst_52 : f32 to vector<8x64xf32>
    %140 = arith.mulf %139, %138 : vector<8x64xf32>
    %cst_53 = arith.constant 5.000000e-01 : f32
    %141 = vector.broadcast %cst_53 : f32 to vector<8x64xf32>
    %142 = arith.addf %140, %141 : vector<8x64xf32>
    %143 = vector.extract_strided_slice %137 {offsets = [0, 64], sizes = [8, 64], strides = [1, 1]} : vector<8x256xf32> to vector<8x64xf32>
    %cst_54 = arith.constant 5.000000e-01 : f32
    %144 = vector.broadcast %cst_54 : f32 to vector<8x64xf32>
    %145 = arith.mulf %144, %143 : vector<8x64xf32>
    %cst_55 = arith.constant 5.000000e-01 : f32
    %146 = vector.broadcast %cst_55 : f32 to vector<8x64xf32>
    %147 = arith.addf %145, %146 : vector<8x64xf32>
    %148 = vector.extract_strided_slice %137 {offsets = [0, 128], sizes = [8, 64], strides = [1, 1]} : vector<8x256xf32> to vector<8x64xf32>
    %cst_56 = arith.constant 5.000000e-01 : f32
    %149 = vector.broadcast %cst_56 : f32 to vector<8x64xf32>
    %150 = arith.mulf %149, %148 : vector<8x64xf32>
    %cst_57 = arith.constant 5.000000e-01 : f32
    %151 = vector.broadcast %cst_57 : f32 to vector<8x64xf32>
    %152 = arith.addf %150, %151 : vector<8x64xf32>
    %153 = vector.extract_strided_slice %137 {offsets = [0, 192], sizes = [8, 64], strides = [1, 1]} : vector<8x256xf32> to vector<8x64xf32>
    %154 = arith.mulf %147, %103 : vector<8x64xf32>
    %155 = arith.mulf %142, %153 : vector<8x64xf32>
    %156 = arith.addf %154, %155 : vector<8x64xf32>
    %157 = math.tanh %156 : vector<8x64xf32>
    %158 = arith.mulf %152, %157 : vector<8x64xf32>
    %cst_58 = arith.constant dense<0.000000e+00> : vector<8x256xf32>
    %159 = tpu.matmul %132, %77, %cst_58 {dimension_numbers = #tpu.dot_dimension_numbers<[1], [0], [0], [1], [0, 0, 1, 1], [], []>} : vector<8x64xf32>, vector<64x256xf32>, vector<8x256xf32> -> vector<8x256xf32>
    %cst_59 = arith.constant dense<0.000000e+00> : vector<8x256xf32>
    %160 = tpu.matmul %158, %76, %cst_59 {dimension_numbers = #tpu.dot_dimension_numbers<[1], [0], [0], [1], [0, 0, 1, 1], [], []>} : vector<8x64xf32>, vector<64x256xf32>, vector<8x256xf32> -> vector<8x256xf32>
    %161 = arith.addf %159, %160 : vector<8x256xf32>
    %162 = vector.broadcast %78 : vector<1x256xf32> to vector<8x256xf32>
    %163 = arith.addf %161, %162 : vector<8x256xf32>
    %164 = math.tanh %163 : vector<8x256xf32>
    %165 = vector.extract_strided_slice %164 {offsets = [0, 0], sizes = [8, 64], strides = [1, 1]} : vector<8x256xf32> to vector<8x64xf32>
    %cst_60 = arith.constant 5.000000e-01 : f32
    %166 = vector.broadcast %cst_60 : f32 to vector<8x64xf32>
    %167 = arith.mulf %166, %165 : vector<8x64xf32>
    %cst_61 = arith.constant 5.000000e-01 : f32
    %168 = vector.broadcast %cst_61 : f32 to vector<8x64xf32>
    %169 = arith.addf %167, %168 : vector<8x64xf32>
    %170 = vector.extract_strided_slice %164 {offsets = [0, 64], sizes = [8, 64], strides = [1, 1]} : vector<8x256xf32> to vector<8x64xf32>
    %cst_62 = arith.constant 5.000000e-01 : f32
    %171 = vector.broadcast %cst_62 : f32 to vector<8x64xf32>
    %172 = arith.mulf %171, %170 : vector<8x64xf32>
    %cst_63 = arith.constant 5.000000e-01 : f32
    %173 = vector.broadcast %cst_63 : f32 to vector<8x64xf32>
    %174 = arith.addf %172, %173 : vector<8x64xf32>
    %175 = vector.extract_strided_slice %164 {offsets = [0, 128], sizes = [8, 64], strides = [1, 1]} : vector<8x256xf32> to vector<8x64xf32>
    %cst_64 = arith.constant 5.000000e-01 : f32
    %176 = vector.broadcast %cst_64 : f32 to vector<8x64xf32>
    %177 = arith.mulf %176, %175 : vector<8x64xf32>
    %cst_65 = arith.constant 5.000000e-01 : f32
    %178 = vector.broadcast %cst_65 : f32 to vector<8x64xf32>
    %179 = arith.addf %177, %178 : vector<8x64xf32>
    %180 = vector.extract_strided_slice %164 {offsets = [0, 192], sizes = [8, 64], strides = [1, 1]} : vector<8x256xf32> to vector<8x64xf32>
    %181 = arith.mulf %174, %130 : vector<8x64xf32>
    %182 = arith.mulf %169, %180 : vector<8x64xf32>
    %183 = arith.addf %181, %182 : vector<8x64xf32>
    %184 = math.tanh %183 : vector<8x64xf32>
    %185 = arith.mulf %179, %184 : vector<8x64xf32>
    %cst_66 = arith.constant dense<0.000000e+00> : vector<8x256xf32>
    %186 = tpu.matmul %158, %75, %cst_66 {dimension_numbers = #tpu.dot_dimension_numbers<[1], [0], [0], [1], [0, 0, 1, 1], [], []>} : vector<8x64xf32>, vector<64x256xf32>, vector<8x256xf32> -> vector<8x256xf32>
    %c2_67 = arith.constant 2 : index
    %c0_68 = arith.constant 0 : index
    %c0_69 = arith.constant 0 : index
    %187 = vector.load %arg11[%c2_67, %c0_68, %c0_69] : memref<8x8x256xf32, #tpu.memory_space<vmem>>, vector<1x8x256xf32>
    %188 = vector.shape_cast %187 : vector<1x8x256xf32> to vector<8x256xf32>
    %189 = arith.addf %186, %188 : vector<8x256xf32>
    %190 = math.tanh %189 : vector<8x256xf32>
    %191 = vector.extract_strided_slice %190 {offsets = [0, 0], sizes = [8, 64], strides = [1, 1]} : vector<8x256xf32> to vector<8x64xf32>
    %cst_70 = arith.constant 5.000000e-01 : f32
    %192 = vector.broadcast %cst_70 : f32 to vector<8x64xf32>
    %193 = arith.mulf %192, %191 : vector<8x64xf32>
    %cst_71 = arith.constant 5.000000e-01 : f32
    %194 = vector.broadcast %cst_71 : f32 to vector<8x64xf32>
    %195 = arith.addf %193, %194 : vector<8x64xf32>
    %196 = vector.extract_strided_slice %190 {offsets = [0, 64], sizes = [8, 64], strides = [1, 1]} : vector<8x256xf32> to vector<8x64xf32>
    %cst_72 = arith.constant 5.000000e-01 : f32
    %197 = vector.broadcast %cst_72 : f32 to vector<8x64xf32>
    %198 = arith.mulf %197, %196 : vector<8x64xf32>
    %cst_73 = arith.constant 5.000000e-01 : f32
    %199 = vector.broadcast %cst_73 : f32 to vector<8x64xf32>
    %200 = arith.addf %198, %199 : vector<8x64xf32>
    %201 = vector.extract_strided_slice %190 {offsets = [0, 128], sizes = [8, 64], strides = [1, 1]} : vector<8x256xf32> to vector<8x64xf32>
    %cst_74 = arith.constant 5.000000e-01 : f32
    %202 = vector.broadcast %cst_74 : f32 to vector<8x64xf32>
    %203 = arith.mulf %202, %201 : vector<8x64xf32>
    %cst_75 = arith.constant 5.000000e-01 : f32
    %204 = vector.broadcast %cst_75 : f32 to vector<8x64xf32>
    %205 = arith.addf %203, %204 : vector<8x64xf32>
    %206 = vector.extract_strided_slice %190 {offsets = [0, 192], sizes = [8, 64], strides = [1, 1]} : vector<8x256xf32> to vector<8x64xf32>
    %207 = arith.mulf %200, %156 : vector<8x64xf32>
    %208 = arith.mulf %195, %206 : vector<8x64xf32>
    %209 = arith.addf %207, %208 : vector<8x64xf32>
    %210 = math.tanh %209 : vector<8x64xf32>
    %211 = arith.mulf %205, %210 : vector<8x64xf32>
    %cst_76 = arith.constant dense<0.000000e+00> : vector<8x256xf32>
    %212 = tpu.matmul %185, %77, %cst_76 {dimension_numbers = #tpu.dot_dimension_numbers<[1], [0], [0], [1], [0, 0, 1, 1], [], []>} : vector<8x64xf32>, vector<64x256xf32>, vector<8x256xf32> -> vector<8x256xf32>
    %cst_77 = arith.constant dense<0.000000e+00> : vector<8x256xf32>
    %213 = tpu.matmul %211, %76, %cst_77 {dimension_numbers = #tpu.dot_dimension_numbers<[1], [0], [0], [1], [0, 0, 1, 1], [], []>} : vector<8x64xf32>, vector<64x256xf32>, vector<8x256xf32> -> vector<8x256xf32>
    %214 = arith.addf %212, %213 : vector<8x256xf32>
    %215 = vector.broadcast %78 : vector<1x256xf32> to vector<8x256xf32>
    %216 = arith.addf %214, %215 : vector<8x256xf32>
    %217 = math.tanh %216 : vector<8x256xf32>
    %218 = vector.extract_strided_slice %217 {offsets = [0, 0], sizes = [8, 64], strides = [1, 1]} : vector<8x256xf32> to vector<8x64xf32>
    %cst_78 = arith.constant 5.000000e-01 : f32
    %219 = vector.broadcast %cst_78 : f32 to vector<8x64xf32>
    %220 = arith.mulf %219, %218 : vector<8x64xf32>
    %cst_79 = arith.constant 5.000000e-01 : f32
    %221 = vector.broadcast %cst_79 : f32 to vector<8x64xf32>
    %222 = arith.addf %220, %221 : vector<8x64xf32>
    %223 = vector.extract_strided_slice %217 {offsets = [0, 64], sizes = [8, 64], strides = [1, 1]} : vector<8x256xf32> to vector<8x64xf32>
    %cst_80 = arith.constant 5.000000e-01 : f32
    %224 = vector.broadcast %cst_80 : f32 to vector<8x64xf32>
    %225 = arith.mulf %224, %223 : vector<8x64xf32>
    %cst_81 = arith.constant 5.000000e-01 : f32
    %226 = vector.broadcast %cst_81 : f32 to vector<8x64xf32>
    %227 = arith.addf %225, %226 : vector<8x64xf32>
    %228 = vector.extract_strided_slice %217 {offsets = [0, 128], sizes = [8, 64], strides = [1, 1]} : vector<8x256xf32> to vector<8x64xf32>
    %cst_82 = arith.constant 5.000000e-01 : f32
    %229 = vector.broadcast %cst_82 : f32 to vector<8x64xf32>
    %230 = arith.mulf %229, %228 : vector<8x64xf32>
    %cst_83 = arith.constant 5.000000e-01 : f32
    %231 = vector.broadcast %cst_83 : f32 to vector<8x64xf32>
    %232 = arith.addf %230, %231 : vector<8x64xf32>
    %233 = vector.extract_strided_slice %217 {offsets = [0, 192], sizes = [8, 64], strides = [1, 1]} : vector<8x256xf32> to vector<8x64xf32>
    %234 = arith.mulf %227, %183 : vector<8x64xf32>
    %235 = arith.mulf %222, %233 : vector<8x64xf32>
    %236 = arith.addf %234, %235 : vector<8x64xf32>
    %237 = math.tanh %236 : vector<8x64xf32>
    %238 = arith.mulf %232, %237 : vector<8x64xf32>
    %cst_84 = arith.constant dense<0.000000e+00> : vector<8x256xf32>
    %239 = tpu.matmul %211, %75, %cst_84 {dimension_numbers = #tpu.dot_dimension_numbers<[1], [0], [0], [1], [0, 0, 1, 1], [], []>} : vector<8x64xf32>, vector<64x256xf32>, vector<8x256xf32> -> vector<8x256xf32>
    %c3_85 = arith.constant 3 : index
    %c0_86 = arith.constant 0 : index
    %c0_87 = arith.constant 0 : index
    %240 = vector.load %arg11[%c3_85, %c0_86, %c0_87] : memref<8x8x256xf32, #tpu.memory_space<vmem>>, vector<1x8x256xf32>
    %241 = vector.shape_cast %240 : vector<1x8x256xf32> to vector<8x256xf32>
    %242 = arith.addf %239, %241 : vector<8x256xf32>
    %243 = math.tanh %242 : vector<8x256xf32>
    %244 = vector.extract_strided_slice %243 {offsets = [0, 0], sizes = [8, 64], strides = [1, 1]} : vector<8x256xf32> to vector<8x64xf32>
    %cst_88 = arith.constant 5.000000e-01 : f32
    %245 = vector.broadcast %cst_88 : f32 to vector<8x64xf32>
    %246 = arith.mulf %245, %244 : vector<8x64xf32>
    %cst_89 = arith.constant 5.000000e-01 : f32
    %247 = vector.broadcast %cst_89 : f32 to vector<8x64xf32>
    %248 = arith.addf %246, %247 : vector<8x64xf32>
    %249 = vector.extract_strided_slice %243 {offsets = [0, 64], sizes = [8, 64], strides = [1, 1]} : vector<8x256xf32> to vector<8x64xf32>
    %cst_90 = arith.constant 5.000000e-01 : f32
    %250 = vector.broadcast %cst_90 : f32 to vector<8x64xf32>
    %251 = arith.mulf %250, %249 : vector<8x64xf32>
    %cst_91 = arith.constant 5.000000e-01 : f32
    %252 = vector.broadcast %cst_91 : f32 to vector<8x64xf32>
    %253 = arith.addf %251, %252 : vector<8x64xf32>
    %254 = vector.extract_strided_slice %243 {offsets = [0, 128], sizes = [8, 64], strides = [1, 1]} : vector<8x256xf32> to vector<8x64xf32>
    %cst_92 = arith.constant 5.000000e-01 : f32
    %255 = vector.broadcast %cst_92 : f32 to vector<8x64xf32>
    %256 = arith.mulf %255, %254 : vector<8x64xf32>
    %cst_93 = arith.constant 5.000000e-01 : f32
    %257 = vector.broadcast %cst_93 : f32 to vector<8x64xf32>
    %258 = arith.addf %256, %257 : vector<8x64xf32>
    %259 = vector.extract_strided_slice %243 {offsets = [0, 192], sizes = [8, 64], strides = [1, 1]} : vector<8x256xf32> to vector<8x64xf32>
    %260 = arith.mulf %253, %209 : vector<8x64xf32>
    %261 = arith.mulf %248, %259 : vector<8x64xf32>
    %262 = arith.addf %260, %261 : vector<8x64xf32>
    %263 = math.tanh %262 : vector<8x64xf32>
    %264 = arith.mulf %258, %263 : vector<8x64xf32>
    %cst_94 = arith.constant dense<0.000000e+00> : vector<8x256xf32>
    %265 = tpu.matmul %238, %77, %cst_94 {dimension_numbers = #tpu.dot_dimension_numbers<[1], [0], [0], [1], [0, 0, 1, 1], [], []>} : vector<8x64xf32>, vector<64x256xf32>, vector<8x256xf32> -> vector<8x256xf32>
    %cst_95 = arith.constant dense<0.000000e+00> : vector<8x256xf32>
    %266 = tpu.matmul %264, %76, %cst_95 {dimension_numbers = #tpu.dot_dimension_numbers<[1], [0], [0], [1], [0, 0, 1, 1], [], []>} : vector<8x64xf32>, vector<64x256xf32>, vector<8x256xf32> -> vector<8x256xf32>
    %267 = arith.addf %265, %266 : vector<8x256xf32>
    %268 = vector.broadcast %78 : vector<1x256xf32> to vector<8x256xf32>
    %269 = arith.addf %267, %268 : vector<8x256xf32>
    %270 = math.tanh %269 : vector<8x256xf32>
    %271 = vector.extract_strided_slice %270 {offsets = [0, 0], sizes = [8, 64], strides = [1, 1]} : vector<8x256xf32> to vector<8x64xf32>
    %cst_96 = arith.constant 5.000000e-01 : f32
    %272 = vector.broadcast %cst_96 : f32 to vector<8x64xf32>
    %273 = arith.mulf %272, %271 : vector<8x64xf32>
    %cst_97 = arith.constant 5.000000e-01 : f32
    %274 = vector.broadcast %cst_97 : f32 to vector<8x64xf32>
    %275 = arith.addf %273, %274 : vector<8x64xf32>
    %276 = vector.extract_strided_slice %270 {offsets = [0, 64], sizes = [8, 64], strides = [1, 1]} : vector<8x256xf32> to vector<8x64xf32>
    %cst_98 = arith.constant 5.000000e-01 : f32
    %277 = vector.broadcast %cst_98 : f32 to vector<8x64xf32>
    %278 = arith.mulf %277, %276 : vector<8x64xf32>
    %cst_99 = arith.constant 5.000000e-01 : f32
    %279 = vector.broadcast %cst_99 : f32 to vector<8x64xf32>
    %280 = arith.addf %278, %279 : vector<8x64xf32>
    %281 = vector.extract_strided_slice %270 {offsets = [0, 128], sizes = [8, 64], strides = [1, 1]} : vector<8x256xf32> to vector<8x64xf32>
    %cst_100 = arith.constant 5.000000e-01 : f32
    %282 = vector.broadcast %cst_100 : f32 to vector<8x64xf32>
    %283 = arith.mulf %282, %281 : vector<8x64xf32>
    %cst_101 = arith.constant 5.000000e-01 : f32
    %284 = vector.broadcast %cst_101 : f32 to vector<8x64xf32>
    %285 = arith.addf %283, %284 : vector<8x64xf32>
    %286 = vector.extract_strided_slice %270 {offsets = [0, 192], sizes = [8, 64], strides = [1, 1]} : vector<8x256xf32> to vector<8x64xf32>
    %287 = arith.mulf %280, %236 : vector<8x64xf32>
    %288 = arith.mulf %275, %286 : vector<8x64xf32>
    %289 = arith.addf %287, %288 : vector<8x64xf32>
    %290 = math.tanh %289 : vector<8x64xf32>
    %291 = arith.mulf %285, %290 : vector<8x64xf32>
    %cst_102 = arith.constant dense<0.000000e+00> : vector<8x256xf32>
    %292 = tpu.matmul %264, %75, %cst_102 {dimension_numbers = #tpu.dot_dimension_numbers<[1], [0], [0], [1], [0, 0, 1, 1], [], []>} : vector<8x64xf32>, vector<64x256xf32>, vector<8x256xf32> -> vector<8x256xf32>
    %c4_103 = arith.constant 4 : index
    %c0_104 = arith.constant 0 : index
    %c0_105 = arith.constant 0 : index
    %293 = vector.load %arg11[%c4_103, %c0_104, %c0_105] : memref<8x8x256xf32, #tpu.memory_space<vmem>>, vector<1x8x256xf32>
    %294 = vector.shape_cast %293 : vector<1x8x256xf32> to vector<8x256xf32>
    %295 = arith.addf %292, %294 : vector<8x256xf32>
    %296 = math.tanh %295 : vector<8x256xf32>
    %297 = vector.extract_strided_slice %296 {offsets = [0, 0], sizes = [8, 64], strides = [1, 1]} : vector<8x256xf32> to vector<8x64xf32>
    %cst_106 = arith.constant 5.000000e-01 : f32
    %298 = vector.broadcast %cst_106 : f32 to vector<8x64xf32>
    %299 = arith.mulf %298, %297 : vector<8x64xf32>
    %cst_107 = arith.constant 5.000000e-01 : f32
    %300 = vector.broadcast %cst_107 : f32 to vector<8x64xf32>
    %301 = arith.addf %299, %300 : vector<8x64xf32>
    %302 = vector.extract_strided_slice %296 {offsets = [0, 64], sizes = [8, 64], strides = [1, 1]} : vector<8x256xf32> to vector<8x64xf32>
    %cst_108 = arith.constant 5.000000e-01 : f32
    %303 = vector.broadcast %cst_108 : f32 to vector<8x64xf32>
    %304 = arith.mulf %303, %302 : vector<8x64xf32>
    %cst_109 = arith.constant 5.000000e-01 : f32
    %305 = vector.broadcast %cst_109 : f32 to vector<8x64xf32>
    %306 = arith.addf %304, %305 : vector<8x64xf32>
    %307 = vector.extract_strided_slice %296 {offsets = [0, 128], sizes = [8, 64], strides = [1, 1]} : vector<8x256xf32> to vector<8x64xf32>
    %cst_110 = arith.constant 5.000000e-01 : f32
    %308 = vector.broadcast %cst_110 : f32 to vector<8x64xf32>
    %309 = arith.mulf %308, %307 : vector<8x64xf32>
    %cst_111 = arith.constant 5.000000e-01 : f32
    %310 = vector.broadcast %cst_111 : f32 to vector<8x64xf32>
    %311 = arith.addf %309, %310 : vector<8x64xf32>
    %312 = vector.extract_strided_slice %296 {offsets = [0, 192], sizes = [8, 64], strides = [1, 1]} : vector<8x256xf32> to vector<8x64xf32>
    %313 = arith.mulf %306, %262 : vector<8x64xf32>
    %314 = arith.mulf %301, %312 : vector<8x64xf32>
    %315 = arith.addf %313, %314 : vector<8x64xf32>
    %316 = math.tanh %315 : vector<8x64xf32>
    %317 = arith.mulf %311, %316 : vector<8x64xf32>
    %cst_112 = arith.constant dense<0.000000e+00> : vector<8x256xf32>
    %318 = tpu.matmul %291, %77, %cst_112 {dimension_numbers = #tpu.dot_dimension_numbers<[1], [0], [0], [1], [0, 0, 1, 1], [], []>} : vector<8x64xf32>, vector<64x256xf32>, vector<8x256xf32> -> vector<8x256xf32>
    %cst_113 = arith.constant dense<0.000000e+00> : vector<8x256xf32>
    %319 = tpu.matmul %317, %76, %cst_113 {dimension_numbers = #tpu.dot_dimension_numbers<[1], [0], [0], [1], [0, 0, 1, 1], [], []>} : vector<8x64xf32>, vector<64x256xf32>, vector<8x256xf32> -> vector<8x256xf32>
    %320 = arith.addf %318, %319 : vector<8x256xf32>
    %321 = vector.broadcast %78 : vector<1x256xf32> to vector<8x256xf32>
    %322 = arith.addf %320, %321 : vector<8x256xf32>
    %323 = math.tanh %322 : vector<8x256xf32>
    %324 = vector.extract_strided_slice %323 {offsets = [0, 0], sizes = [8, 64], strides = [1, 1]} : vector<8x256xf32> to vector<8x64xf32>
    %cst_114 = arith.constant 5.000000e-01 : f32
    %325 = vector.broadcast %cst_114 : f32 to vector<8x64xf32>
    %326 = arith.mulf %325, %324 : vector<8x64xf32>
    %cst_115 = arith.constant 5.000000e-01 : f32
    %327 = vector.broadcast %cst_115 : f32 to vector<8x64xf32>
    %328 = arith.addf %326, %327 : vector<8x64xf32>
    %329 = vector.extract_strided_slice %323 {offsets = [0, 64], sizes = [8, 64], strides = [1, 1]} : vector<8x256xf32> to vector<8x64xf32>
    %cst_116 = arith.constant 5.000000e-01 : f32
    %330 = vector.broadcast %cst_116 : f32 to vector<8x64xf32>
    %331 = arith.mulf %330, %329 : vector<8x64xf32>
    %cst_117 = arith.constant 5.000000e-01 : f32
    %332 = vector.broadcast %cst_117 : f32 to vector<8x64xf32>
    %333 = arith.addf %331, %332 : vector<8x64xf32>
    %334 = vector.extract_strided_slice %323 {offsets = [0, 128], sizes = [8, 64], strides = [1, 1]} : vector<8x256xf32> to vector<8x64xf32>
    %cst_118 = arith.constant 5.000000e-01 : f32
    %335 = vector.broadcast %cst_118 : f32 to vector<8x64xf32>
    %336 = arith.mulf %335, %334 : vector<8x64xf32>
    %cst_119 = arith.constant 5.000000e-01 : f32
    %337 = vector.broadcast %cst_119 : f32 to vector<8x64xf32>
    %338 = arith.addf %336, %337 : vector<8x64xf32>
    %339 = vector.extract_strided_slice %323 {offsets = [0, 192], sizes = [8, 64], strides = [1, 1]} : vector<8x256xf32> to vector<8x64xf32>
    %340 = arith.mulf %333, %289 : vector<8x64xf32>
    %341 = arith.mulf %328, %339 : vector<8x64xf32>
    %342 = arith.addf %340, %341 : vector<8x64xf32>
    %343 = math.tanh %342 : vector<8x64xf32>
    %344 = arith.mulf %338, %343 : vector<8x64xf32>
    %cst_120 = arith.constant dense<0.000000e+00> : vector<8x256xf32>
    %345 = tpu.matmul %317, %75, %cst_120 {dimension_numbers = #tpu.dot_dimension_numbers<[1], [0], [0], [1], [0, 0, 1, 1], [], []>} : vector<8x64xf32>, vector<64x256xf32>, vector<8x256xf32> -> vector<8x256xf32>
    %c5_121 = arith.constant 5 : index
    %c0_122 = arith.constant 0 : index
    %c0_123 = arith.constant 0 : index
    %346 = vector.load %arg11[%c5_121, %c0_122, %c0_123] : memref<8x8x256xf32, #tpu.memory_space<vmem>>, vector<1x8x256xf32>
    %347 = vector.shape_cast %346 : vector<1x8x256xf32> to vector<8x256xf32>
    %348 = arith.addf %345, %347 : vector<8x256xf32>
    %349 = math.tanh %348 : vector<8x256xf32>
    %350 = vector.extract_strided_slice %349 {offsets = [0, 0], sizes = [8, 64], strides = [1, 1]} : vector<8x256xf32> to vector<8x64xf32>
    %cst_124 = arith.constant 5.000000e-01 : f32
    %351 = vector.broadcast %cst_124 : f32 to vector<8x64xf32>
    %352 = arith.mulf %351, %350 : vector<8x64xf32>
    %cst_125 = arith.constant 5.000000e-01 : f32
    %353 = vector.broadcast %cst_125 : f32 to vector<8x64xf32>
    %354 = arith.addf %352, %353 : vector<8x64xf32>
    %355 = vector.extract_strided_slice %349 {offsets = [0, 64], sizes = [8, 64], strides = [1, 1]} : vector<8x256xf32> to vector<8x64xf32>
    %cst_126 = arith.constant 5.000000e-01 : f32
    %356 = vector.broadcast %cst_126 : f32 to vector<8x64xf32>
    %357 = arith.mulf %356, %355 : vector<8x64xf32>
    %cst_127 = arith.constant 5.000000e-01 : f32
    %358 = vector.broadcast %cst_127 : f32 to vector<8x64xf32>
    %359 = arith.addf %357, %358 : vector<8x64xf32>
    %360 = vector.extract_strided_slice %349 {offsets = [0, 128], sizes = [8, 64], strides = [1, 1]} : vector<8x256xf32> to vector<8x64xf32>
    %cst_128 = arith.constant 5.000000e-01 : f32
    %361 = vector.broadcast %cst_128 : f32 to vector<8x64xf32>
    %362 = arith.mulf %361, %360 : vector<8x64xf32>
    %cst_129 = arith.constant 5.000000e-01 : f32
    %363 = vector.broadcast %cst_129 : f32 to vector<8x64xf32>
    %364 = arith.addf %362, %363 : vector<8x64xf32>
    %365 = vector.extract_strided_slice %349 {offsets = [0, 192], sizes = [8, 64], strides = [1, 1]} : vector<8x256xf32> to vector<8x64xf32>
    %366 = arith.mulf %359, %315 : vector<8x64xf32>
    %367 = arith.mulf %354, %365 : vector<8x64xf32>
    %368 = arith.addf %366, %367 : vector<8x64xf32>
    %369 = math.tanh %368 : vector<8x64xf32>
    %370 = arith.mulf %364, %369 : vector<8x64xf32>
    %cst_130 = arith.constant dense<0.000000e+00> : vector<8x256xf32>
    %371 = tpu.matmul %344, %77, %cst_130 {dimension_numbers = #tpu.dot_dimension_numbers<[1], [0], [0], [1], [0, 0, 1, 1], [], []>} : vector<8x64xf32>, vector<64x256xf32>, vector<8x256xf32> -> vector<8x256xf32>
    %cst_131 = arith.constant dense<0.000000e+00> : vector<8x256xf32>
    %372 = tpu.matmul %370, %76, %cst_131 {dimension_numbers = #tpu.dot_dimension_numbers<[1], [0], [0], [1], [0, 0, 1, 1], [], []>} : vector<8x64xf32>, vector<64x256xf32>, vector<8x256xf32> -> vector<8x256xf32>
    %373 = arith.addf %371, %372 : vector<8x256xf32>
    %374 = vector.broadcast %78 : vector<1x256xf32> to vector<8x256xf32>
    %375 = arith.addf %373, %374 : vector<8x256xf32>
    %376 = math.tanh %375 : vector<8x256xf32>
    %377 = vector.extract_strided_slice %376 {offsets = [0, 0], sizes = [8, 64], strides = [1, 1]} : vector<8x256xf32> to vector<8x64xf32>
    %cst_132 = arith.constant 5.000000e-01 : f32
    %378 = vector.broadcast %cst_132 : f32 to vector<8x64xf32>
    %379 = arith.mulf %378, %377 : vector<8x64xf32>
    %cst_133 = arith.constant 5.000000e-01 : f32
    %380 = vector.broadcast %cst_133 : f32 to vector<8x64xf32>
    %381 = arith.addf %379, %380 : vector<8x64xf32>
    %382 = vector.extract_strided_slice %376 {offsets = [0, 64], sizes = [8, 64], strides = [1, 1]} : vector<8x256xf32> to vector<8x64xf32>
    %cst_134 = arith.constant 5.000000e-01 : f32
    %383 = vector.broadcast %cst_134 : f32 to vector<8x64xf32>
    %384 = arith.mulf %383, %382 : vector<8x64xf32>
    %cst_135 = arith.constant 5.000000e-01 : f32
    %385 = vector.broadcast %cst_135 : f32 to vector<8x64xf32>
    %386 = arith.addf %384, %385 : vector<8x64xf32>
    %387 = vector.extract_strided_slice %376 {offsets = [0, 128], sizes = [8, 64], strides = [1, 1]} : vector<8x256xf32> to vector<8x64xf32>
    %cst_136 = arith.constant 5.000000e-01 : f32
    %388 = vector.broadcast %cst_136 : f32 to vector<8x64xf32>
    %389 = arith.mulf %388, %387 : vector<8x64xf32>
    %cst_137 = arith.constant 5.000000e-01 : f32
    %390 = vector.broadcast %cst_137 : f32 to vector<8x64xf32>
    %391 = arith.addf %389, %390 : vector<8x64xf32>
    %392 = vector.extract_strided_slice %376 {offsets = [0, 192], sizes = [8, 64], strides = [1, 1]} : vector<8x256xf32> to vector<8x64xf32>
    %393 = arith.mulf %386, %342 : vector<8x64xf32>
    %394 = arith.mulf %381, %392 : vector<8x64xf32>
    %395 = arith.addf %393, %394 : vector<8x64xf32>
    %396 = math.tanh %395 : vector<8x64xf32>
    %397 = arith.mulf %391, %396 : vector<8x64xf32>
    %cst_138 = arith.constant dense<0.000000e+00> : vector<8x256xf32>
    %398 = tpu.matmul %370, %75, %cst_138 {dimension_numbers = #tpu.dot_dimension_numbers<[1], [0], [0], [1], [0, 0, 1, 1], [], []>} : vector<8x64xf32>, vector<64x256xf32>, vector<8x256xf32> -> vector<8x256xf32>
    %c6_139 = arith.constant 6 : index
    %c0_140 = arith.constant 0 : index
    %c0_141 = arith.constant 0 : index
    %399 = vector.load %arg11[%c6_139, %c0_140, %c0_141] : memref<8x8x256xf32, #tpu.memory_space<vmem>>, vector<1x8x256xf32>
    %400 = vector.shape_cast %399 : vector<1x8x256xf32> to vector<8x256xf32>
    %401 = arith.addf %398, %400 : vector<8x256xf32>
    %402 = math.tanh %401 : vector<8x256xf32>
    %403 = vector.extract_strided_slice %402 {offsets = [0, 0], sizes = [8, 64], strides = [1, 1]} : vector<8x256xf32> to vector<8x64xf32>
    %cst_142 = arith.constant 5.000000e-01 : f32
    %404 = vector.broadcast %cst_142 : f32 to vector<8x64xf32>
    %405 = arith.mulf %404, %403 : vector<8x64xf32>
    %cst_143 = arith.constant 5.000000e-01 : f32
    %406 = vector.broadcast %cst_143 : f32 to vector<8x64xf32>
    %407 = arith.addf %405, %406 : vector<8x64xf32>
    %408 = vector.extract_strided_slice %402 {offsets = [0, 64], sizes = [8, 64], strides = [1, 1]} : vector<8x256xf32> to vector<8x64xf32>
    %cst_144 = arith.constant 5.000000e-01 : f32
    %409 = vector.broadcast %cst_144 : f32 to vector<8x64xf32>
    %410 = arith.mulf %409, %408 : vector<8x64xf32>
    %cst_145 = arith.constant 5.000000e-01 : f32
    %411 = vector.broadcast %cst_145 : f32 to vector<8x64xf32>
    %412 = arith.addf %410, %411 : vector<8x64xf32>
    %413 = vector.extract_strided_slice %402 {offsets = [0, 128], sizes = [8, 64], strides = [1, 1]} : vector<8x256xf32> to vector<8x64xf32>
    %cst_146 = arith.constant 5.000000e-01 : f32
    %414 = vector.broadcast %cst_146 : f32 to vector<8x64xf32>
    %415 = arith.mulf %414, %413 : vector<8x64xf32>
    %cst_147 = arith.constant 5.000000e-01 : f32
    %416 = vector.broadcast %cst_147 : f32 to vector<8x64xf32>
    %417 = arith.addf %415, %416 : vector<8x64xf32>
    %418 = vector.extract_strided_slice %402 {offsets = [0, 192], sizes = [8, 64], strides = [1, 1]} : vector<8x256xf32> to vector<8x64xf32>
    %419 = arith.mulf %412, %368 : vector<8x64xf32>
    %420 = arith.mulf %407, %418 : vector<8x64xf32>
    %421 = arith.addf %419, %420 : vector<8x64xf32>
    %422 = math.tanh %421 : vector<8x64xf32>
    %423 = arith.mulf %417, %422 : vector<8x64xf32>
    %cst_148 = arith.constant dense<0.000000e+00> : vector<8x256xf32>
    %424 = tpu.matmul %397, %77, %cst_148 {dimension_numbers = #tpu.dot_dimension_numbers<[1], [0], [0], [1], [0, 0, 1, 1], [], []>} : vector<8x64xf32>, vector<64x256xf32>, vector<8x256xf32> -> vector<8x256xf32>
    %cst_149 = arith.constant dense<0.000000e+00> : vector<8x256xf32>
    %425 = tpu.matmul %423, %76, %cst_149 {dimension_numbers = #tpu.dot_dimension_numbers<[1], [0], [0], [1], [0, 0, 1, 1], [], []>} : vector<8x64xf32>, vector<64x256xf32>, vector<8x256xf32> -> vector<8x256xf32>
    %426 = arith.addf %424, %425 : vector<8x256xf32>
    %427 = vector.broadcast %78 : vector<1x256xf32> to vector<8x256xf32>
    %428 = arith.addf %426, %427 : vector<8x256xf32>
    %429 = math.tanh %428 : vector<8x256xf32>
    %430 = vector.extract_strided_slice %429 {offsets = [0, 0], sizes = [8, 64], strides = [1, 1]} : vector<8x256xf32> to vector<8x64xf32>
    %cst_150 = arith.constant 5.000000e-01 : f32
    %431 = vector.broadcast %cst_150 : f32 to vector<8x64xf32>
    %432 = arith.mulf %431, %430 : vector<8x64xf32>
    %cst_151 = arith.constant 5.000000e-01 : f32
    %433 = vector.broadcast %cst_151 : f32 to vector<8x64xf32>
    %434 = arith.addf %432, %433 : vector<8x64xf32>
    %435 = vector.extract_strided_slice %429 {offsets = [0, 64], sizes = [8, 64], strides = [1, 1]} : vector<8x256xf32> to vector<8x64xf32>
    %cst_152 = arith.constant 5.000000e-01 : f32
    %436 = vector.broadcast %cst_152 : f32 to vector<8x64xf32>
    %437 = arith.mulf %436, %435 : vector<8x64xf32>
    %cst_153 = arith.constant 5.000000e-01 : f32
    %438 = vector.broadcast %cst_153 : f32 to vector<8x64xf32>
    %439 = arith.addf %437, %438 : vector<8x64xf32>
    %440 = vector.extract_strided_slice %429 {offsets = [0, 128], sizes = [8, 64], strides = [1, 1]} : vector<8x256xf32> to vector<8x64xf32>
    %cst_154 = arith.constant 5.000000e-01 : f32
    %441 = vector.broadcast %cst_154 : f32 to vector<8x64xf32>
    %442 = arith.mulf %441, %440 : vector<8x64xf32>
    %cst_155 = arith.constant 5.000000e-01 : f32
    %443 = vector.broadcast %cst_155 : f32 to vector<8x64xf32>
    %444 = arith.addf %442, %443 : vector<8x64xf32>
    %445 = vector.extract_strided_slice %429 {offsets = [0, 192], sizes = [8, 64], strides = [1, 1]} : vector<8x256xf32> to vector<8x64xf32>
    %446 = arith.mulf %439, %395 : vector<8x64xf32>
    %447 = arith.mulf %434, %445 : vector<8x64xf32>
    %448 = arith.addf %446, %447 : vector<8x64xf32>
    %449 = math.tanh %448 : vector<8x64xf32>
    %450 = arith.mulf %444, %449 : vector<8x64xf32>
    %cst_156 = arith.constant dense<0.000000e+00> : vector<8x256xf32>
    %451 = tpu.matmul %423, %75, %cst_156 {dimension_numbers = #tpu.dot_dimension_numbers<[1], [0], [0], [1], [0, 0, 1, 1], [], []>} : vector<8x64xf32>, vector<64x256xf32>, vector<8x256xf32> -> vector<8x256xf32>
    %c7_157 = arith.constant 7 : index
    %c0_158 = arith.constant 0 : index
    %c0_159 = arith.constant 0 : index
    %452 = vector.load %arg11[%c7_157, %c0_158, %c0_159] : memref<8x8x256xf32, #tpu.memory_space<vmem>>, vector<1x8x256xf32>
    %453 = vector.shape_cast %452 : vector<1x8x256xf32> to vector<8x256xf32>
    %454 = arith.addf %451, %453 : vector<8x256xf32>
    %455 = math.tanh %454 : vector<8x256xf32>
    %456 = vector.extract_strided_slice %455 {offsets = [0, 0], sizes = [8, 64], strides = [1, 1]} : vector<8x256xf32> to vector<8x64xf32>
    %cst_160 = arith.constant 5.000000e-01 : f32
    %457 = vector.broadcast %cst_160 : f32 to vector<8x64xf32>
    %458 = arith.mulf %457, %456 : vector<8x64xf32>
    %cst_161 = arith.constant 5.000000e-01 : f32
    %459 = vector.broadcast %cst_161 : f32 to vector<8x64xf32>
    %460 = arith.addf %458, %459 : vector<8x64xf32>
    %461 = vector.extract_strided_slice %455 {offsets = [0, 64], sizes = [8, 64], strides = [1, 1]} : vector<8x256xf32> to vector<8x64xf32>
    %cst_162 = arith.constant 5.000000e-01 : f32
    %462 = vector.broadcast %cst_162 : f32 to vector<8x64xf32>
    %463 = arith.mulf %462, %461 : vector<8x64xf32>
    %cst_163 = arith.constant 5.000000e-01 : f32
    %464 = vector.broadcast %cst_163 : f32 to vector<8x64xf32>
    %465 = arith.addf %463, %464 : vector<8x64xf32>
    %466 = vector.extract_strided_slice %455 {offsets = [0, 128], sizes = [8, 64], strides = [1, 1]} : vector<8x256xf32> to vector<8x64xf32>
    %cst_164 = arith.constant 5.000000e-01 : f32
    %467 = vector.broadcast %cst_164 : f32 to vector<8x64xf32>
    %468 = arith.mulf %467, %466 : vector<8x64xf32>
    %cst_165 = arith.constant 5.000000e-01 : f32
    %469 = vector.broadcast %cst_165 : f32 to vector<8x64xf32>
    %470 = arith.addf %468, %469 : vector<8x64xf32>
    %471 = vector.extract_strided_slice %455 {offsets = [0, 192], sizes = [8, 64], strides = [1, 1]} : vector<8x256xf32> to vector<8x64xf32>
    %472 = arith.mulf %465, %421 : vector<8x64xf32>
    %473 = arith.mulf %460, %471 : vector<8x64xf32>
    %474 = arith.addf %472, %473 : vector<8x64xf32>
    %475 = math.tanh %474 : vector<8x64xf32>
    %476 = arith.mulf %470, %475 : vector<8x64xf32>
    %cst_166 = arith.constant dense<0.000000e+00> : vector<8x256xf32>
    %477 = tpu.matmul %450, %77, %cst_166 {dimension_numbers = #tpu.dot_dimension_numbers<[1], [0], [0], [1], [0, 0, 1, 1], [], []>} : vector<8x64xf32>, vector<64x256xf32>, vector<8x256xf32> -> vector<8x256xf32>
    %cst_167 = arith.constant dense<0.000000e+00> : vector<8x256xf32>
    %478 = tpu.matmul %476, %76, %cst_167 {dimension_numbers = #tpu.dot_dimension_numbers<[1], [0], [0], [1], [0, 0, 1, 1], [], []>} : vector<8x64xf32>, vector<64x256xf32>, vector<8x256xf32> -> vector<8x256xf32>
    %479 = arith.addf %477, %478 : vector<8x256xf32>
    %480 = vector.broadcast %78 : vector<1x256xf32> to vector<8x256xf32>
    %481 = arith.addf %479, %480 : vector<8x256xf32>
    %482 = math.tanh %481 : vector<8x256xf32>
    %483 = vector.extract_strided_slice %482 {offsets = [0, 0], sizes = [8, 64], strides = [1, 1]} : vector<8x256xf32> to vector<8x64xf32>
    %cst_168 = arith.constant 5.000000e-01 : f32
    %484 = vector.broadcast %cst_168 : f32 to vector<8x64xf32>
    %485 = arith.mulf %484, %483 : vector<8x64xf32>
    %cst_169 = arith.constant 5.000000e-01 : f32
    %486 = vector.broadcast %cst_169 : f32 to vector<8x64xf32>
    %487 = arith.addf %485, %486 : vector<8x64xf32>
    %488 = vector.extract_strided_slice %482 {offsets = [0, 64], sizes = [8, 64], strides = [1, 1]} : vector<8x256xf32> to vector<8x64xf32>
    %cst_170 = arith.constant 5.000000e-01 : f32
    %489 = vector.broadcast %cst_170 : f32 to vector<8x64xf32>
    %490 = arith.mulf %489, %488 : vector<8x64xf32>
    %cst_171 = arith.constant 5.000000e-01 : f32
    %491 = vector.broadcast %cst_171 : f32 to vector<8x64xf32>
    %492 = arith.addf %490, %491 : vector<8x64xf32>
    %493 = vector.extract_strided_slice %482 {offsets = [0, 128], sizes = [8, 64], strides = [1, 1]} : vector<8x256xf32> to vector<8x64xf32>
    %cst_172 = arith.constant 5.000000e-01 : f32
    %494 = vector.broadcast %cst_172 : f32 to vector<8x64xf32>
    %495 = arith.mulf %494, %493 : vector<8x64xf32>
    %cst_173 = arith.constant 5.000000e-01 : f32
    %496 = vector.broadcast %cst_173 : f32 to vector<8x64xf32>
    %497 = arith.addf %495, %496 : vector<8x64xf32>
    %498 = vector.extract_strided_slice %482 {offsets = [0, 192], sizes = [8, 64], strides = [1, 1]} : vector<8x256xf32> to vector<8x64xf32>
    %499 = arith.mulf %492, %448 : vector<8x64xf32>
    %500 = arith.mulf %487, %498 : vector<8x64xf32>
    %501 = arith.addf %499, %500 : vector<8x64xf32>
    %502 = math.tanh %501 : vector<8x64xf32>
    %503 = arith.mulf %497, %502 : vector<8x64xf32>
    %c0_174 = arith.constant 0 : index
    %c0_175 = arith.constant 0 : index
    %504 = vector.load %arg8[%c0_174, %c0_175] : memref<64x128xf32, #tpu.memory_space<vmem>>, vector<64x128xf32>
    %cst_176 = arith.constant dense<0.000000e+00> : vector<8x128xf32>
    %505 = tpu.matmul %503, %504, %cst_176 {dimension_numbers = #tpu.dot_dimension_numbers<[1], [0], [0], [1], [0, 0, 1, 1], [], []>} : vector<8x64xf32>, vector<64x128xf32>, vector<8x128xf32> -> vector<8x128xf32>
    %c0_177 = arith.constant 0 : index
    %c0_178 = arith.constant 0 : index
    %506 = vector.load %arg9[%c0_177, %c0_178] : memref<1x128xf32, #tpu.memory_space<vmem>>, vector<1x128xf32>
    %507 = vector.broadcast %506 : vector<1x128xf32> to vector<8x128xf32>
    %508 = arith.addf %505, %507 : vector<8x128xf32>
    %c0_179 = arith.constant 0 : index
    %c0_180 = arith.constant 0 : index
    %509 = vector.load %arg10[%c0_179, %c0_180] : memref<8x128xf32, #tpu.memory_space<vmem>>, vector<8x128xf32>
    tpu.vector_store %arg10[%c0_179, %c0_180], %508 {strides = array<i32>} : memref<8x128xf32, #tpu.memory_space<vmem>>, vector<8x128xf32>,
    return
  }
  func.func @transform_0(%arg0: i32) -> (i32, i32) {
    %c0_i32 = arith.constant 0 : i32
    %c0_i32_0 = arith.constant 0 : i32
    return %arg0, %c0_i32 : i32, i32
  }
  func.func @transform_1(%arg0: i32) -> (i32, i32) {
    %c0_i32 = arith.constant 0 : i32
    %c0_i32_0 = arith.constant 0 : i32
    %c0_i32_1 = arith.constant 0 : i32
    return %c0_i32, %c0_i32_0 : i32, i32
  }
  func.func @transform_2(%arg0: i32) -> (i32, i32) {
    %c0_i32 = arith.constant 0 : i32
    %c0_i32_0 = arith.constant 0 : i32
    %c0_i32_1 = arith.constant 0 : i32
    return %c0_i32, %c0_i32_0 : i32, i32
  }
  func.func @transform_3(%arg0: i32) -> (i32, i32) {
    %c0_i32 = arith.constant 0 : i32
    %c0_i32_0 = arith.constant 0 : i32
    %c0_i32_1 = arith.constant 0 : i32
    return %c0_i32, %c0_i32_0 : i32, i32
  }
  func.func @transform_4(%arg0: i32) -> (i32, i32) {
    %c0_i32 = arith.constant 0 : i32
    %c0_i32_0 = arith.constant 0 : i32
    %c0_i32_1 = arith.constant 0 : i32
    return %c0_i32, %c0_i32_0 : i32, i32
  }
  func.func @transform_5(%arg0: i32) -> (i32, i32) {
    %c0_i32 = arith.constant 0 : i32
    %c0_i32_0 = arith.constant 0 : i32
    %c0_i32_1 = arith.constant 0 : i32
    return %c0_i32, %c0_i32_0 : i32, i32
  }
  func.func @transform_6(%arg0: i32) -> (i32, i32) {
    %c0_i32 = arith.constant 0 : i32
    %c0_i32_0 = arith.constant 0 : i32
    %c0_i32_1 = arith.constant 0 : i32
    return %c0_i32, %c0_i32_0 : i32, i32
  }
  func.func @transform_7(%arg0: i32) -> (i32, i32) {
    %c0_i32 = arith.constant 0 : i32
    %c0_i32_0 = arith.constant 0 : i32
    %c0_i32_1 = arith.constant 0 : i32
    return %c0_i32, %c0_i32_0 : i32, i32
  }
  func.func @transform_8(%arg0: i32) -> (i32, i32) {
    %c0_i32 = arith.constant 0 : i32
    %c0_i32_0 = arith.constant 0 : i32
    %c0_i32_1 = arith.constant 0 : i32
    return %c0_i32, %c0_i32_0 : i32, i32
  }
  func.func @transform_9(%arg0: i32) -> (i32, i32) {
    %c0_i32 = arith.constant 0 : i32
    %c0_i32_0 = arith.constant 0 : i32
    return %arg0, %c0_i32 : i32, i32
  }
}

</mosaic_0001>

<llo_original>
// kernel: tpu_custom_call.1
$region0: #{tpu_custom_call.1}
  #allocation0 [shape = 'u32[]', space=smem, size = 0x4, offset = 0x4, fixed_abs, tag = 'smem constant byte address 0x4 - core index']
  #allocation1 [shape = 'u32[72,128]{1,0:T(1,128)}', space=vmem, size = 0x9000, scoped, tag = 'internal scratch']
  #allocation2 [shape = 'f32[8,8,256]{2,1,0:T(8,128)}', space=vmem, size = 0x10000, scoped, tag = 'scratch operand']
  %s0 = inlined_call_operand.hbm [shape: f32[8,128], index: 0, kind: input, shape index: {}]
  %s1 = inlined_call_operand.hbm [shape: f32[1,256], index: 1, kind: input, shape index: {}]
  %s2 = inlined_call_operand.hbm [shape: f32[1,256], index: 2, kind: input, shape index: {}]
  %s3 = inlined_call_operand.hbm [shape: f32[64,256], index: 3, kind: input, shape index: {}]
  %s4 = inlined_call_operand.hbm [shape: f32[64,256], index: 4, kind: input, shape index: {}]
  %s5 = inlined_call_operand.hbm [shape: f32[64,256], index: 5, kind: input, shape index: {}]
  %s6 = inlined_call_operand.vmem [shape: f32[1,256], index: 6, kind: input, shape index: {}]
  %s7 = inlined_call_operand.hbm [shape: f32[64,128], index: 7, kind: input, shape index: {}]
  %s8 = inlined_call_operand.vmem [shape: f32[1,128], index: 8, kind: input, shape index: {}]
  %s9 = inlined_call_operand.hbm [shape: f32[8,128], index: 9, kind: output, shape index: {}]
  %s10 = sld [smem:[#allocation0]]
  $region74: #{tpu_custom_call.1} parent=0
    _
  %s12 = ssub.s32 1, %s10
  %s13 = scalar_select 0, %s12, %s10
  $region1: #{tpu_custom_call.1} parent=0
    #allocation3 [shape = 'u8[4096]{0}', space=vmem, size = 0x1000, scoped, tag = 'input window, operand 0, single buffered']
    #allocation4 [shape = 's32[1]{0}', space=sflag, size = 0x4, scoped, tag = 'scoped memory for tpu_custom_call.1']
    #allocation5 [shape = 's32[1]{0}', space=sflag, size = 0x4, scoped, tag = 'scoped memory for tpu_custom_call.1']
    #allocation6 [shape = 'u8[1024]{0}', space=vmem, size = 0x400, scoped, tag = 'input window, operand 1, single buffered']
    #allocation7 [shape = 's32[1]{0}', space=sflag, size = 0x4, scoped, tag = 'scoped memory for tpu_custom_call.1']
    #allocation8 [shape = 'u8[1024]{0}', space=vmem, size = 0x400, scoped, tag = 'input window, operand 2, single buffered']
    #allocation9 [shape = 'u8[65536]{0}', space=vmem, size = 0x10000, scoped, tag = 'input window, operand 3, single buffered']
    #allocation10 [shape = 's32[1]{0}', space=sflag, size = 0x4, scoped, tag = 'scoped memory for tpu_custom_call.1']
    #allocation11 [shape = 'u8[65536]{0}', space=vmem, size = 0x10000, scoped, tag = 'input window, operand 4, single buffered']
    #allocation12 [shape = 'u8[65536]{0}', space=vmem, size = 0x10000, scoped, tag = 'input window, operand 5, single buffered']
    #allocation13 [shape = 's32[1]{0}', space=sflag, size = 0x4, scoped, tag = 'scoped memory for tpu_custom_call.1']
    #allocation14 [shape = 'u8[32768]{0}', space=vmem, size = 0x8000, scoped, tag = 'input window, operand 7, single buffered']
    #allocation15 [shape = 'u8[4096]{0}', space=vmem, size = 0x1000, scoped, tag = 'output window, operand 0, single buffered']
    %14 = vsyncpa [#allocation4], 0
    %15 = vsyncpa [#allocation7], 0
    %16 = vsyncpa [#allocation10], 0
    %17 = vsyncpa [#allocation13], 0
    %18 = vsyncpa [#allocation5], 0
    // Predicated region
    $region2: #{tpu_custom_call.1} parent=1 // pred_check
      _
    $region3: #{tpu_custom_call.1} parent=1 // pred_check_branch
      %20 = sbr.rel (0) target = $region5
    $region4: #{tpu_custom_call.1} parent=1 // pred_region
      %22 = vsyncadd [#allocation4], 0
      %s24 = sshll.u32 %s0, 4
      %s25 = int_to_ptr.hbm [resolvable:$true] %s24
      %s26 = sshll.u32 [#allocation3], 4
      %s27 = int_to_ptr.vmem [resolvable:$true] %s26
      %29 = dma.hbm_to_vmem [thread:$0]  %s25, 128, %s27, [#allocation4]
    $region5: #{tpu_custom_call.1} parent=1 // pred_fallthru
      _
    // Predicated region
    $region6: #{tpu_custom_call.1} parent=1 // pred_check
      _
    $region7: #{tpu_custom_call.1} parent=1 // pred_check_branch
      %31 = sbr.rel (0) target = $region9
    $region8: #{tpu_custom_call.1} parent=1 // pred_region
      %33 = vsyncadd [#allocation7], 0
      %s35 = sshll.u32 %s1, 4
      %s36 = int_to_ptr.hbm [resolvable:$true] %s35
      %s37 = sshll.u32 [#allocation6], 4
      %s38 = int_to_ptr.vmem [resolvable:$true] %s37
      %40 = dma.hbm_to_vmem [thread:$0]  %s36, 32, %s38, [#allocation7]
    $region9: #{tpu_custom_call.1} parent=1 // pred_fallthru
      _
    // Predicated region
    $region10: #{tpu_custom_call.1} parent=1 // pred_check
      _
    $region11: #{tpu_custom_call.1} parent=1 // pred_check_branch
      %42 = sbr.rel (0) target = $region13
    $region12: #{tpu_custom_call.1} parent=1 // pred_region
      %44 = vsyncadd [#allocation7], 0
      %s46 = sshll.u32 %s2, 4
      %s47 = int_to_ptr.hbm [resolvable:$true] %s46
      %s48 = sshll.u32 [#allocation8], 4
      %s49 = int_to_ptr.vmem [resolvable:$true] %s48
      %51 = dma.hbm_to_vmem [thread:$0]  %s47, 32, %s49, [#allocation7]
    $region13: #{tpu_custom_call.1} parent=1 // pred_fallthru
      _
    // Predicated region
    $region14: #{tpu_custom_call.1} parent=1 // pred_check
      _
    $region15: #{tpu_custom_call.1} parent=1 // pred_check_branch
      %53 = sbr.rel (0) target = $region17
    $region16: #{tpu_custom_call.1} parent=1 // pred_region
      %55 = vsyncadd [#allocation10], 0
      %s56 = sshll.u32 %s3, 4
      %s57 = int_to_ptr.hbm [resolvable:$true] %s56
      %s58 = sshll.u32 [#allocation9], 4
      %s59 = int_to_ptr.vmem [resolvable:$true] %s58
      %64 = dma.hbm_to_vmem [thread:$0]  %s57, 2048, %s59, [#allocation10], 256, 256, 16
    $region17: #{tpu_custom_call.1} parent=1 // pred_fallthru
      _
    // Predicated region
    $region18: #{tpu_custom_call.1} parent=1 // pred_check
      _
    $region19: #{tpu_custom_call.1} parent=1 // pred_check_branch
      %66 = sbr.rel (0) target = $region21
    $region20: #{tpu_custom_call.1} parent=1 // pred_region
      %68 = vsyncadd [#allocation10], 0
      %s69 = sshll.u32 %s4, 4
      %s70 = int_to_ptr.hbm [resolvable:$true] %s69
      %s71 = sshll.u32 [#allocation11], 4
      %s72 = int_to_ptr.vmem [resolvable:$true] %s71
      %77 = dma.hbm_to_vmem [thread:$0]  %s70, 2048, %s72, [#allocation10], 256, 256, 16
    $region21: #{tpu_custom_call.1} parent=1 // pred_fallthru
      _
    // Predicated region
    $region22: #{tpu_custom_call.1} parent=1 // pred_check
      _
    $region23: #{tpu_custom_call.1} parent=1 // pred_check_branch
      %79 = sbr.rel (0) target = $region25
    $region24: #{tpu_custom_call.1} parent=1 // pred_region
      %81 = vsyncadd [#allocation13], 0
      %s82 = sshll.u32 %s5, 4
      %s83 = int_to_ptr.hbm [resolvable:$true] %s82
      %s84 = sshll.u32 [#allocation12], 4
      %s85 = int_to_ptr.vmem [resolvable:$true] %s84
      %90 = dma.hbm_to_vmem [thread:$0]  %s83, 2048, %s85, [#allocation13], 256, 256, 16
    $region25: #{tpu_custom_call.1} parent=1 // pred_fallthru
      _
    // Predicated region
    $region26: #{tpu_custom_call.1} parent=1 // pred_check
      _
    $region27: #{tpu_custom_call.1} parent=1 // pred_check_branch
      %92 = sbr.rel (0) target = $region29
    $region28: #{tpu_custom_call.1} parent=1 // pred_region
      _
    $region29: #{tpu_custom_call.1} parent=1 // pred_fallthru
      _
    // Predicated region
    $region30: #{tpu_custom_call.1} parent=1 // pred_check
      _
    $region31: #{tpu_custom_call.1} parent=1 // pred_check_branch
      %94 = sbr.rel (0) target = $region33
    $region32: #{tpu_custom_call.1} parent=1 // pred_region
      %96 = vsyncadd [#allocation13], 0
      %s97 = sshll.u32 %s7, 4
      %s98 = int_to_ptr.hbm [resolvable:$true] %s97
      %s99 = sshll.u32 [#allocation14], 4
      %s100 = int_to_ptr.vmem [resolvable:$true] %s99
      %105 = dma.hbm_to_vmem [thread:$0]  %s98, 1024, %s100, [#allocation13], 128, 128, 8
    $region33: #{tpu_custom_call.1} parent=1 // pred_fallthru
      _
    // Predicated region
    $region34: #{tpu_custom_call.1} parent=1 // pred_check
      _
    $region35: #{tpu_custom_call.1} parent=1 // pred_check_branch
      %107 = sbr.rel (0) target = $region37
    $region36: #{tpu_custom_call.1} parent=1 // pred_region
      _
    $region37: #{tpu_custom_call.1} parent=1 // pred_fallthru
      _
    // Predicated region
    $region38: #{tpu_custom_call.1} parent=1 // pred_check
      _
    $region39: #{tpu_custom_call.1} parent=1 // pred_check_branch
      %109 = sbr.rel (0) target = $region41
    $region40: #{tpu_custom_call.1} parent=1 // pred_region
      %111 = dma.done [#allocation4], 128
    $region41: #{tpu_custom_call.1} parent=1 // pred_fallthru
      _
    // Predicated region
    $region42: #{tpu_custom_call.1} parent=1 // pred_check
      _
    $region43: #{tpu_custom_call.1} parent=1 // pred_check_branch
      %113 = sbr.rel (0) target = $region45
    $region44: #{tpu_custom_call.1} parent=1 // pred_region
      %115 = dma.done [#allocation7], 32
    $region45: #{tpu_custom_call.1} parent=1 // pred_fallthru
      _
    // Predicated region
    $region46: #{tpu_custom_call.1} parent=1 // pred_check
      _
    $region47: #{tpu_custom_call.1} parent=1 // pred_check_branch
      %117 = sbr.rel (0) target = $region49
    $region48: #{tpu_custom_call.1} parent=1 // pred_region
      %119 = dma.done [#allocation7], 32
    $region49: #{tpu_custom_call.1} parent=1 // pred_fallthru
      _
    // Predicated region
    $region50: #{tpu_custom_call.1} parent=1 // pred_check
      _
    $region51: #{tpu_custom_call.1} parent=1 // pred_check_branch
      %121 = sbr.rel (0) target = $region53
    $region52: #{tpu_custom_call.1} parent=1 // pred_region
      %123 = dma.done [#allocation10], 2048
    $region53: #{tpu_custom_call.1} parent=1 // pred_fallthru
      _
    // Predicated region
    $region54: #{tpu_custom_call.1} parent=1 // pred_check
      _
    $region55: #{tpu_custom_call.1} parent=1 // pred_check_branch
      %125 = sbr.rel (0) target = $region57
    $region56: #{tpu_custom_call.1} parent=1 // pred_region
      %127 = dma.done [#allocation10], 2048
    $region57: #{tpu_custom_call.1} parent=1 // pred_fallthru
      _
    // Predicated region
    $region58: #{tpu_custom_call.1} parent=1 // pred_check
      _
    $region59: #{tpu_custom_call.1} parent=1 // pred_check_branch
      %129 = sbr.rel (0) target = $region61
    $region60: #{tpu_custom_call.1} parent=1 // pred_region
      %131 = dma.done [#allocation13], 2048
    $region61: #{tpu_custom_call.1} parent=1 // pred_fallthru
      _
    // Predicated region
    $region62: #{tpu_custom_call.1} parent=1 // pred_check
      _
    $region63: #{tpu_custom_call.1} parent=1 // pred_check_branch
      %133 = sbr.rel (0) target = $region65
    $region64: #{tpu_custom_call.1} parent=1 // pred_region
      %135 = dma.done [#allocation13], 1024
    $region65: #{tpu_custom_call.1} parent=1 // pred_fallthru
      _
    %v136 = vld [vmem:[#allocation3] sm:$0xff]
    %v137 = vld [vmem:[#allocation6] sm:$0x3]
    %v138 = vld [vmem:[#allocation8] sm:$0x3]
    %140 = vset.pattern.permute.xlu0 0
    %141 = vperm.xlu0 %140, %v136
    %v142 = vpop.permute.xlu0 %141
    %v145 = vperm.slane %v137, 0
    %v146 = vperm.slane %v137, 1
    %v149 = vmul.f32 %v142, %v145
    %v150 = vmul.f32 %v142, %v146
    %v152 = vperm.slane %v138, 0
    %v153 = vperm.slane %v138, 1
    %v156 = vadd.f32 %v149, %v152
    %v157 = vadd.f32 %v150, %v153
    %158 = vst [vmem:[#allocation2] sm:$0xff] %v156
    %159 = vst [vmem:[#allocation2 + $0x8] sm:$0xff] %v157
    %160 = vset.pattern.permute.xlu0 1
    %161 = vperm.xlu0 %160, %v136
    %v162 = vpop.permute.xlu0 %161
    %v164 = vmul.f32 %v162, %v145
    %v165 = vmul.f32 %v162, %v146
    %v166 = vadd.f32 %v164, %v152
    %v167 = vadd.f32 %v165, %v153
    %s168 = scalar_lea.vmem [#allocation2], 16
    %169 = vst [vmem:[%s168] sm:$0xff] %v166
    %170 = vst [vmem:[%s168 + $0x8] sm:$0xff] %v167
    %171 = vset.pattern.permute.xlu0 2
    %172 = vperm.xlu0 %171, %v136
    %v173 = vpop.permute.xlu0 %172
    %v175 = vmul.f32 %v173, %v145
    %v176 = vmul.f32 %v173, %v146
    %v177 = vadd.f32 %v175, %v152
    %v178 = vadd.f32 %v176, %v153
    %s179 = scalar_lea.vmem [#allocation2], 32
    %180 = vst [vmem:[%s179] sm:$0xff] %v177
    %181 = vst [vmem:[%s179 + $0x8] sm:$0xff] %v178
    %182 = vset.pattern.permute.xlu0 3
    %183 = vperm.xlu0 %182, %v136
    %v184 = vpop.permute.xlu0 %183
    %v186 = vmul.f32 %v184, %v145
    %v187 = vmul.f32 %v184, %v146
    %v188 = vadd.f32 %v186, %v152
    %v189 = vadd.f32 %v187, %v153
    %s190 = scalar_lea.vmem [#allocation2], 48
    %191 = vst [vmem:[%s190] sm:$0xff] %v188
    %192 = vst [vmem:[%s190 + $0x8] sm:$0xff] %v189
    %193 = vset.pattern.permute.xlu0 4
    %194 = vperm.xlu0 %193, %v136
    %v195 = vpop.permute.xlu0 %194
    %v197 = vmul.f32 %v195, %v145
    %v198 = vmul.f32 %v195, %v146
    %v199 = vadd.f32 %v197, %v152
    %v200 = vadd.f32 %v198, %v153
    %s201 = scalar_lea.vmem [#allocation2], 64
    %202 = vst [vmem:[%s201] sm:$0xff] %v199
    %203 = vst [vmem:[%s201 + $0x8] sm:$0xff] %v200
    %204 = vset.pattern.permute.xlu0 5
    %205 = vperm.xlu0 %204, %v136
    %v206 = vpop.permute.xlu0 %205
    %v208 = vmul.f32 %v206, %v145
    %v209 = vmul.f32 %v206, %v146
    %v210 = vadd.f32 %v208, %v152
    %v211 = vadd.f32 %v209, %v153
    %s212 = scalar_lea.vmem [#allocation2], 80
    %213 = vst [vmem:[%s212] sm:$0xff] %v210
    %214 = vst [vmem:[%s212 + $0x8] sm:$0xff] %v211
    %215 = vset.pattern.permute.xlu0 6
    %216 = vperm.xlu0 %215, %v136
    %v217 = vpop.permute.xlu0 %216
    %v219 = vmul.f32 %v217, %v145
    %v220 = vmul.f32 %v217, %v146
    %v221 = vadd.f32 %v219, %v152
    %v222 = vadd.f32 %v220, %v153
    %s223 = scalar_lea.vmem [#allocation2], 96
    %224 = vst [vmem:[%s223] sm:$0xff] %v221
    %225 = vst [vmem:[%s223 + $0x8] sm:$0xff] %v222
    %226 = vset.pattern.permute.xlu0 7
    %227 = vperm.xlu0 %226, %v136
    %v228 = vpop.permute.xlu0 %227
    %v230 = vmul.f32 %v228, %v145
    %v231 = vmul.f32 %v228, %v146
    %v232 = vadd.f32 %v230, %v152
    %v233 = vadd.f32 %v231, %v153
    %s234 = scalar_lea.vmem [#allocation2], 112
    %235 = vst [vmem:[%s234] sm:$0xff] %v232
    %236 = vst [vmem:[%s234 + $0x8] sm:$0xff] %v233
    %v237 = vld [vmem:[#allocation9] sm:$0xff]
    %v238 = vld [vmem:[#allocation9 + $0x8] sm:$0xff]
    %v239 = vld [vmem:[#allocation9 + $0x10] sm:$0xff]
    %v240 = vld [vmem:[#allocation9 + $0x18] sm:$0xff]
    %v241 = vld [vmem:[#allocation9 + $0x20] sm:$0xff]
    %v242 = vld [vmem:[#allocation9 + $0x28] sm:$0xff]
    %v243 = vld [vmem:[#allocation9 + $0x30] sm:$0xff]
    %v244 = vld [vmem:[#allocation9 + $0x38] sm:$0xff]
    %v245 = vld [vmem:[#allocation9 + $0x40] sm:$0xff]
    %v246 = vld [vmem:[#allocation9 + $0x48] sm:$0xff]
    %v247 = vld [vmem:[#allocation9 + $0x50] sm:$0xff]
    %v248 = vld [vmem:[#allocation9 + $0x58] sm:$0xff]
    %v249 = vld [vmem:[#allocation9 + $0x60] sm:$0xff]
    %v250 = vld [vmem:[#allocation9 + $0x68] sm:$0xff]
    %v251 = vld [vmem:[#allocation9 + $0x70] sm:$0xff]
    %v252 = vld [vmem:[#allocation9 + $0x78] sm:$0xff]
    %v253 = vld [vmem:[#allocation11] sm:$0xff]
    %v254 = vld [vmem:[#allocation11 + $0x8] sm:$0xff]
    %v255 = vld [vmem:[#allocation11 + $0x10] sm:$0xff]
    %v256 = vld [vmem:[#allocation11 + $0x18] sm:$0xff]
    %v257 = vld [vmem:[#allocation11 + $0x20] sm:$0xff]
    %v258 = vld [vmem:[#allocation11 + $0x28] sm:$0xff]
    %v259 = vld [vmem:[#allocation11 + $0x30] sm:$0xff]
    %v260 = vld [vmem:[#allocation11 + $0x38] sm:$0xff]
    %v261 = vld [vmem:[#allocation11 + $0x40] sm:$0xff]
    %v262 = vld [vmem:[#allocation11 + $0x48] sm:$0xff]
    %v263 = vld [vmem:[#allocation11 + $0x50] sm:$0xff]
    %v264 = vld [vmem:[#allocation11 + $0x58] sm:$0xff]
    %v265 = vld [vmem:[#allocation11 + $0x60] sm:$0xff]
    %v266 = vld [vmem:[#allocation11 + $0x68] sm:$0xff]
    %v267 = vld [vmem:[#allocation11 + $0x70] sm:$0xff]
    %v268 = vld [vmem:[#allocation11 + $0x78] sm:$0xff]
    %v269 = vld [vmem:[#allocation12] sm:$0xff]
    %v270 = vld [vmem:[#allocation12 + $0x8] sm:$0xff]
    %v271 = vld [vmem:[#allocation12 + $0x10] sm:$0xff]
    %v272 = vld [vmem:[#allocation12 + $0x18] sm:$0xff]
    %v273 = vld [vmem:[#allocation12 + $0x20] sm:$0xff]
    %v274 = vld [vmem:[#allocation12 + $0x28] sm:$0xff]
    %v275 = vld [vmem:[#allocation12 + $0x30] sm:$0xff]
    %v276 = vld [vmem:[#allocation12 + $0x38] sm:$0xff]
    %v277 = vld [vmem:[#allocation12 + $0x40] sm:$0xff]
    %v278 = vld [vmem:[#allocation12 + $0x48] sm:$0xff]
    %v279 = vld [vmem:[#allocation12 + $0x50] sm:$0xff]
    %v280 = vld [vmem:[#allocation12 + $0x58] sm:$0xff]
    %v281 = vld [vmem:[#allocation12 + $0x60] sm:$0xff]
    %v282 = vld [vmem:[#allocation12 + $0x68] sm:$0xff]
    %v283 = vld [vmem:[#allocation12 + $0x70] sm:$0xff]
    %v284 = vld [vmem:[#allocation12 + $0x78] sm:$0xff]
    %v285 = vld [vmem:[%s6] sm:$0x3]
    %v286 = vld [vmem:[#allocation2] sm:$0xff]
    %v287 = vld [vmem:[#allocation2 + $0x8] sm:$0xff]
    %vm288 = vcmask 523264
    %v290 = vsel %vm288, 0.0, 0
    %292 = vmatpush.msra.mxu0 0.0
    %293 = vmatpush.msra.mxu0 0.0
    %294 = vmatpush.msra.mxu0 0.0
    %295 = vmatpush.msra.mxu0 0.0
    %296 = vmatpush.msra.mxu0 0.0
    %297 = vmatpush.msra.mxu0 0.0
    %298 = vmatpush.msra.mxu0 0.0
    %299 = vmatpush.msra.mxu0 0.0
    %300 = vmatpush.msra.mxu0 %v251
    %301 = vmatpush.msra.mxu0 %v249
    %302 = vmatpush.msra.mxu0 %v247
    %303 = vmatpush.msra.mxu0 %v245
    %304 = vmatpush.msra.mxu0 %v243
    %305 = vmatpush.msra.mxu0 %v241
    %306 = vmatpush.msra.mxu0 %v239
    %307 = vmatpush.msra.mxu0 %v237
    %308 = vmatmul.f32.gmra.mxu0 %v290
    %v309 = vpop.f32.mrf.mxu0
    %v310 = vadd.f32 %v286, %v309
    %311 = vdwg.mxu0
    %312 = vmatpush.msra.mxu0 0.0
    %313 = vmatpush.msra.mxu0 0.0
    %314 = vmatpush.msra.mxu0 0.0
    %315 = vmatpush.msra.mxu0 0.0
    %316 = vmatpush.msra.mxu0 0.0
    %317 = vmatpush.msra.mxu0 0.0
    %318 = vmatpush.msra.mxu0 0.0
    %319 = vmatpush.msra.mxu0 0.0
    %320 = vmatpush.msra.mxu0 %v252
    %321 = vmatpush.msra.mxu0 %v250
    %322 = vmatpush.msra.mxu0 %v248
    %323 = vmatpush.msra.mxu0 %v246
    %324 = vmatpush.msra.mxu0 %v244
    %325 = vmatpush.msra.mxu0 %v242
    %326 = vmatpush.msra.mxu0 %v240
    %327 = vmatpush.msra.mxu0 %v238
    %328 = vmatmul.f32.gmra.mxu0 %v290
    %v329 = vpop.f32.mrf.mxu0
    %v330 = vadd.f32 %v287, %v329
    %331 = vdwg.mxu0
    %v332 = vtanh.pop %v310
    %v333 = vtanh.pop %v330
    %v334 = vmul.f32 %v332, 0.5
    %v335 = vadd.f32 %v334, 0.5
    %v336 = vmul.f32 %v333, 0.5
    %v337 = vadd.f32 %v336, 0.5
    %v338 = vmul.f32 %v335, 0.0
    %340 = vrot.lane.b32.xlu0 %v333, 64
    %v341 = vpop.permute.xlu0 %340
    %v343 = vmul.f32 %v335, %v341
    %345 = vrot.lane.b32.xlu0 %v343, 64
    %v346 = vpop.permute.xlu0 %345
    %v348 = vadd.f32 %v338, %v346
    %v349 = vtanh.pop %v348
    %351 = vrot.lane.b32.xlu0 %v349, 64
    %v352 = vpop.permute.xlu0 %351
    %v354 = vmul.f32 %v337, %v352
    %v356 = vsel %vm288, %v354, 0
    %358 = vmatpush.msra.mxu0 0.0
    %359 = vmatpush.msra.mxu0 0.0
    %360 = vmatpush.msra.mxu0 0.0
    %361 = vmatpush.msra.mxu0 0.0
    %362 = vmatpush.msra.mxu0 0.0
    %363 = vmatpush.msra.mxu0 0.0
    %364 = vmatpush.msra.mxu0 0.0
    %365 = vmatpush.msra.mxu0 0.0
    %366 = vmatpush.msra.mxu0 %v267
    %367 = vmatpush.msra.mxu0 %v265
    %368 = vmatpush.msra.mxu0 %v263
    %369 = vmatpush.msra.mxu0 %v261
    %370 = vmatpush.msra.mxu0 %v259
    %371 = vmatpush.msra.mxu0 %v257
    %372 = vmatpush.msra.mxu0 %v255
    %373 = vmatpush.msra.mxu0 %v253
    %374 = vmatmul.f32.gmra.mxu0 %v356
    %v375 = vpop.f32.mrf.mxu0
    %v376 = vadd.f32 0.0, %v375
    %377 = vdwg.mxu0
    %378 = vmatpush.msra.mxu0 0.0
    %379 = vmatpush.msra.mxu0 0.0
    %380 = vmatpush.msra.mxu0 0.0
    %381 = vmatpush.msra.mxu0 0.0
    %382 = vmatpush.msra.mxu0 0.0
    %383 = vmatpush.msra.mxu0 0.0
    %384 = vmatpush.msra.mxu0 0.0
    %385 = vmatpush.msra.mxu0 0.0
    %386 = vmatpush.msra.mxu0 %v268
    %387 = vmatpush.msra.mxu0 %v266
    %388 = vmatpush.msra.mxu0 %v264
    %389 = vmatpush.msra.mxu0 %v262
    %390 = vmatpush.msra.mxu0 %v260
    %391 = vmatpush.msra.mxu0 %v258
    %392 = vmatpush.msra.mxu0 %v256
    %393 = vmatpush.msra.mxu0 %v254
    %394 = vmatmul.f32.gmra.mxu0 %v356
    %v395 = vpop.f32.mrf.mxu0
    %v396 = vadd.f32 0.0, %v395
    %397 = vdwg.mxu0
    %398 = vmatpush.msra.mxu0 0.0
    %399 = vmatpush.msra.mxu0 0.0
    %400 = vmatpush.msra.mxu0 0.0
    %401 = vmatpush.msra.mxu0 0.0
    %402 = vmatpush.msra.mxu0 0.0
    %403 = vmatpush.msra.mxu0 0.0
    %404 = vmatpush.msra.mxu0 0.0
    %405 = vmatpush.msra.mxu0 0.0
    %406 = vmatpush.msra.mxu0 %v283
    %407 = vmatpush.msra.mxu0 %v281
    %408 = vmatpush.msra.mxu0 %v279
    %409 = vmatpush.msra.mxu0 %v277
    %410 = vmatpush.msra.mxu0 %v275
    %411 = vmatpush.msra.mxu0 %v273
    %412 = vmatpush.msra.mxu0 %v271
    %413 = vmatpush.msra.mxu0 %v269
    %414 = vmatmul.f32.gmra.mxu0 %v290
    %v415 = vpop.f32.mrf.mxu0
    %v416 = vadd.f32 %v376, %v415
    %417 = vdwg.mxu0
    %418 = vmatpush.msra.mxu0 0.0
    %419 = vmatpush.msra.mxu0 0.0
    %420 = vmatpush.msra.mxu0 0.0
    %421 = vmatpush.msra.mxu0 0.0
    %422 = vmatpush.msra.mxu0 0.0
    %423 = vmatpush.msra.mxu0 0.0
    %424 = vmatpush.msra.mxu0 0.0
    %425 = vmatpush.msra.mxu0 0.0
    %426 = vmatpush.msra.mxu0 %v284
    %427 = vmatpush.msra.mxu0 %v282
    %428 = vmatpush.msra.mxu0 %v280
    %429 = vmatpush.msra.mxu0 %v278
    %430 = vmatpush.msra.mxu0 %v276
    %431 = vmatpush.msra.mxu0 %v274
    %432 = vmatpush.msra.mxu0 %v272
    %433 = vmatpush.msra.mxu0 %v270
    %434 = vmatmul.f32.gmra.mxu0 %v290
    %v435 = vpop.f32.mrf.mxu0
    %v436 = vadd.f32 %v396, %v435
    %437 = vdwg.mxu0
    %v439 = vperm.slane %v285, 0
    %v440 = vperm.slane %v285, 1
    %v443 = vadd.f32 %v416, %v439
    %v444 = vadd.f32 %v436, %v440
    %v445 = vtanh.pop %v443
    %v446 = vtanh.pop %v444
    %v447 = vmul.f32 %v445, 0.5
    %v448 = vadd.f32 %v447, 0.5
    %v449 = vmul.f32 %v446, 0.5
    %v450 = vadd.f32 %v449, 0.5
    %v451 = vmul.f32 %v448, 0.0
    %453 = vrot.lane.b32.xlu0 %v446, 64
    %v454 = vpop.permute.xlu0 %453
    %v456 = vmul.f32 %v448, %v454
    %458 = vrot.lane.b32.xlu0 %v456, 64
    %v459 = vpop.permute.xlu0 %458
    %v461 = vadd.f32 %v451, %v459
    %v462 = vtanh.pop %v461
    %464 = vrot.lane.b32.xlu0 %v462, 64
    %v465 = vpop.permute.xlu0 %464
    %v467 = vmul.f32 %v450, %v465
    %v468 = vld [vmem:[%s168] sm:$0xff]
    %v469 = vld [vmem:[%s168 + $0x8] sm:$0xff]
    %470 = vmatpush.msra.mxu0 0.0
    %471 = vmatpush.msra.mxu0 0.0
    %472 = vmatpush.msra.mxu0 0.0
    %473 = vmatpush.msra.mxu0 0.0
    %474 = vmatpush.msra.mxu0 0.0
    %475 = vmatpush.msra.mxu0 0.0
    %476 = vmatpush.msra.mxu0 0.0
    %477 = vmatpush.msra.mxu0 0.0
    %478 = vmatpush.msra.mxu0 %v251
    %479 = vmatpush.msra.mxu0 %v249
    %480 = vmatpush.msra.mxu0 %v247
    %481 = vmatpush.msra.mxu0 %v245
    %482 = vmatpush.msra.mxu0 %v243
    %483 = vmatpush.msra.mxu0 %v241
    %484 = vmatpush.msra.mxu0 %v239
    %485 = vmatpush.msra.mxu0 %v237
    %486 = vmatmul.f32.gmra.mxu0 %v356
    %v487 = vpop.f32.mrf.mxu0
    %v488 = vadd.f32 %v468, %v487
    %489 = vdwg.mxu0
    %490 = vmatpush.msra.mxu0 0.0
    %491 = vmatpush.msra.mxu0 0.0
    %492 = vmatpush.msra.mxu0 0.0
    %493 = vmatpush.msra.mxu0 0.0
    %494 = vmatpush.msra.mxu0 0.0
    %495 = vmatpush.msra.mxu0 0.0
    %496 = vmatpush.msra.mxu0 0.0
    %497 = vmatpush.msra.mxu0 0.0
    %498 = vmatpush.msra.mxu0 %v252
    %499 = vmatpush.msra.mxu0 %v250
    %500 = vmatpush.msra.mxu0 %v248
    %501 = vmatpush.msra.mxu0 %v246
    %502 = vmatpush.msra.mxu0 %v244
    %503 = vmatpush.msra.mxu0 %v242
    %504 = vmatpush.msra.mxu0 %v240
    %505 = vmatpush.msra.mxu0 %v238
    %506 = vmatmul.f32.gmra.mxu0 %v356
    %v507 = vpop.f32.mrf.mxu0
    %v508 = vadd.f32 %v469, %v507
    %509 = vdwg.mxu0
    %v510 = vtanh.pop %v488
    %v511 = vtanh.pop %v508
    %v512 = vmul.f32 %v510, 0.5
    %v513 = vadd.f32 %v512, 0.5
    %v514 = vmul.f32 %v511, 0.5
    %v515 = vadd.f32 %v514, 0.5
    %v516 = vmul.f32 %v513, %v348
    %518 = vrot.lane.b32.xlu0 %v511, 64
    %v519 = vpop.permute.xlu0 %518
    %v521 = vmul.f32 %v513, %v519
    %523 = vrot.lane.b32.xlu0 %v521, 64
    %v524 = vpop.permute.xlu0 %523
    %v526 = vadd.f32 %v516, %v524
    %v527 = vtanh.pop %v526
    %529 = vrot.lane.b32.xlu0 %v527, 64
    %v530 = vpop.permute.xlu0 %529
    %v532 = vmul.f32 %v515, %v530
    %v534 = vsel %vm288, %v532, 0
    %536 = vmatpush.msra.mxu0 0.0
    %537 = vmatpush.msra.mxu0 0.0
    %538 = vmatpush.msra.mxu0 0.0
    %539 = vmatpush.msra.mxu0 0.0
    %540 = vmatpush.msra.mxu0 0.0
    %541 = vmatpush.msra.mxu0 0.0
    %542 = vmatpush.msra.mxu0 0.0
    %543 = vmatpush.msra.mxu0 0.0
    %544 = vmatpush.msra.mxu0 %v267
    %545 = vmatpush.msra.mxu0 %v265
    %546 = vmatpush.msra.mxu0 %v263
    %547 = vmatpush.msra.mxu0 %v261
    %548 = vmatpush.msra.mxu0 %v259
    %549 = vmatpush.msra.mxu0 %v257
    %550 = vmatpush.msra.mxu0 %v255
    %551 = vmatpush.msra.mxu0 %v253
    %552 = vmatmul.f32.gmra.mxu0 %v534
    %v553 = vpop.f32.mrf.mxu0
    %v554 = vadd.f32 0.0, %v553
    %555 = vdwg.mxu0
    %556 = vmatpush.msra.mxu0 0.0
    %557 = vmatpush.msra.mxu0 0.0
    %558 = vmatpush.msra.mxu0 0.0
    %559 = vmatpush.msra.mxu0 0.0
    %560 = vmatpush.msra.mxu0 0.0
    %561 = vmatpush.msra.mxu0 0.0
    %562 = vmatpush.msra.mxu0 0.0
    %563 = vmatpush.msra.mxu0 0.0
    %564 = vmatpush.msra.mxu0 %v268
    %565 = vmatpush.msra.mxu0 %v266
    %566 = vmatpush.msra.mxu0 %v264
    %567 = vmatpush.msra.mxu0 %v262
    %568 = vmatpush.msra.mxu0 %v260
    %569 = vmatpush.msra.mxu0 %v258
    %570 = vmatpush.msra.mxu0 %v256
    %571 = vmatpush.msra.mxu0 %v254
    %572 = vmatmul.f32.gmra.mxu0 %v534
    %v573 = vpop.f32.mrf.mxu0
    %v574 = vadd.f32 0.0, %v573
    %575 = vdwg.mxu0
    %v577 = vsel %vm288, %v467, 0
    %579 = vmatpush.msra.mxu0 0.0
    %580 = vmatpush.msra.mxu0 0.0
    %581 = vmatpush.msra.mxu0 0.0
    %582 = vmatpush.msra.mxu0 0.0
    %583 = vmatpush.msra.mxu0 0.0
    %584 = vmatpush.msra.mxu0 0.0
    %585 = vmatpush.msra.mxu0 0.0
    %586 = vmatpush.msra.mxu0 0.0
    %587 = vmatpush.msra.mxu0 %v283
    %588 = vmatpush.msra.mxu0 %v281
    %589 = vmatpush.msra.mxu0 %v279
    %590 = vmatpush.msra.mxu0 %v277
    %591 = vmatpush.msra.mxu0 %v275
    %592 = vmatpush.msra.mxu0 %v273
    %593 = vmatpush.msra.mxu0 %v271
    %594 = vmatpush.msra.mxu0 %v269
    %595 = vmatmul.f32.gmra.mxu0 %v577
    %v596 = vpop.f32.mrf.mxu0
    %v597 = vadd.f32 %v554, %v596
    %598 = vdwg.mxu0
    %599 = vmatpush.msra.mxu0 0.0
    %600 = vmatpush.msra.mxu0 0.0
    %601 = vmatpush.msra.mxu0 0.0
    %602 = vmatpush.msra.mxu0 0.0
    %603 = vmatpush.msra.mxu0 0.0
    %604 = vmatpush.msra.mxu0 0.0
    %605 = vmatpush.msra.mxu0 0.0
    %606 = vmatpush.msra.mxu0 0.0
    %607 = vmatpush.msra.mxu0 %v284
    %608 = vmatpush.msra.mxu0 %v282
    %609 = vmatpush.msra.mxu0 %v280
    %610 = vmatpush.msra.mxu0 %v278
    %611 = vmatpush.msra.mxu0 %v276
    %612 = vmatpush.msra.mxu0 %v274
    %613 = vmatpush.msra.mxu0 %v272
    %614 = vmatpush.msra.mxu0 %v270
    %615 = vmatmul.f32.gmra.mxu0 %v577
    %v616 = vpop.f32.mrf.mxu0
    %v617 = vadd.f32 %v574, %v616
    %618 = vdwg.mxu0
    %v619 = vadd.f32 %v597, %v439
    %v620 = vadd.f32 %v617, %v440
    %v621 = vtanh.pop %v619
    %v622 = vtanh.pop %v620
    %v623 = vmul.f32 %v621, 0.5
    %v624 = vadd.f32 %v623, 0.5
    %v625 = vmul.f32 %v622, 0.5
    %v626 = vadd.f32 %v625, 0.5
    %v627 = vmul.f32 %v624, %v461
    %629 = vrot.lane.b32.xlu0 %v622, 64
    %v630 = vpop.permute.xlu0 %629
    %v632 = vmul.f32 %v624, %v630
    %634 = vrot.lane.b32.xlu0 %v632, 64
    %v635 = vpop.permute.xlu0 %634
    %v637 = vadd.f32 %v627, %v635
    %v638 = vtanh.pop %v637
    %640 = vrot.lane.b32.xlu0 %v638, 64
    %v641 = vpop.permute.xlu0 %640
    %v643 = vmul.f32 %v626, %v641
    %v644 = vld [vmem:[%s179] sm:$0xff]
    %v645 = vld [vmem:[%s179 + $0x8] sm:$0xff]
    %646 = vmatpush.msra.mxu0 0.0
    %647 = vmatpush.msra.mxu0 0.0
    %648 = vmatpush.msra.mxu0 0.0
    %649 = vmatpush.msra.mxu0 0.0
    %650 = vmatpush.msra.mxu0 0.0
    %651 = vmatpush.msra.mxu0 0.0
    %652 = vmatpush.msra.mxu0 0.0
    %653 = vmatpush.msra.mxu0 0.0
    %654 = vmatpush.msra.mxu0 %v251
    %655 = vmatpush.msra.mxu0 %v249
    %656 = vmatpush.msra.mxu0 %v247
    %657 = vmatpush.msra.mxu0 %v245
    %658 = vmatpush.msra.mxu0 %v243
    %659 = vmatpush.msra.mxu0 %v241
    %660 = vmatpush.msra.mxu0 %v239
    %661 = vmatpush.msra.mxu0 %v237
    %662 = vmatmul.f32.gmra.mxu0 %v534
    %v663 = vpop.f32.mrf.mxu0
    %v664 = vadd.f32 %v644, %v663
    %665 = vdwg.mxu0
    %666 = vmatpush.msra.mxu0 0.0
    %667 = vmatpush.msra.mxu0 0.0
    %668 = vmatpush.msra.mxu0 0.0
    %669 = vmatpush.msra.mxu0 0.0
    %670 = vmatpush.msra.mxu0 0.0
    %671 = vmatpush.msra.mxu0 0.0
    %672 = vmatpush.msra.mxu0 0.0
    %673 = vmatpush.msra.mxu0 0.0
    %674 = vmatpush.msra.mxu0 %v252
    %675 = vmatpush.msra.mxu0 %v250
    %676 = vmatpush.msra.mxu0 %v248
    %677 = vmatpush.msra.mxu0 %v246
    %678 = vmatpush.msra.mxu0 %v244
    %679 = vmatpush.msra.mxu0 %v242
    %680 = vmatpush.msra.mxu0 %v240
    %681 = vmatpush.msra.mxu0 %v238
    %682 = vmatmul.f32.gmra.mxu0 %v534
    %v683 = vpop.f32.mrf.mxu0
    %v684 = vadd.f32 %v645, %v683
    %685 = vdwg.mxu0
    %v686 = vtanh.pop %v664
    %v687 = vtanh.pop %v684
    %v688 = vmul.f32 %v686, 0.5
    %v689 = vadd.f32 %v688, 0.5
    %v690 = vmul.f32 %v687, 0.5
    %v691 = vadd.f32 %v690, 0.5
    %v692 = vmul.f32 %v689, %v526
    %694 = vrot.lane.b32.xlu0 %v687, 64
    %v695 = vpop.permute.xlu0 %694
    %v697 = vmul.f32 %v689, %v695
    %699 = vrot.lane.b32.xlu0 %v697, 64
    %v700 = vpop.permute.xlu0 %699
    %v702 = vadd.f32 %v692, %v700
    %v703 = vtanh.pop %v702
    %705 = vrot.lane.b32.xlu0 %v703, 64
    %v706 = vpop.permute.xlu0 %705
    %v708 = vmul.f32 %v691, %v706
    %v710 = vsel %vm288, %v708, 0
    %712 = vmatpush.msra.mxu0 0.0
    %713 = vmatpush.msra.mxu0 0.0
    %714 = vmatpush.msra.mxu0 0.0
    %715 = vmatpush.msra.mxu0 0.0
    %716 = vmatpush.msra.mxu0 0.0
    %717 = vmatpush.msra.mxu0 0.0
    %718 = vmatpush.msra.mxu0 0.0
    %719 = vmatpush.msra.mxu0 0.0
    %720 = vmatpush.msra.mxu0 %v267
    %721 = vmatpush.msra.mxu0 %v265
    %722 = vmatpush.msra.mxu0 %v263
    %723 = vmatpush.msra.mxu0 %v261
    %724 = vmatpush.msra.mxu0 %v259
    %725 = vmatpush.msra.mxu0 %v257
    %726 = vmatpush.msra.mxu0 %v255
    %727 = vmatpush.msra.mxu0 %v253
    %728 = vmatmul.f32.gmra.mxu0 %v710
    %v729 = vpop.f32.mrf.mxu0
    %v730 = vadd.f32 0.0, %v729
    %731 = vdwg.mxu0
    %732 = vmatpush.msra.mxu0 0.0
    %733 = vmatpush.msra.mxu0 0.0
    %734 = vmatpush.msra.mxu0 0.0
    %735 = vmatpush.msra.mxu0 0.0
    %736 = vmatpush.msra.mxu0 0.0
    %737 = vmatpush.msra.mxu0 0.0
    %738 = vmatpush.msra.mxu0 0.0
    %739 = vmatpush.msra.mxu0 0.0
    %740 = vmatpush.msra.mxu0 %v268
    %741 = vmatpush.msra.mxu0 %v266
    %742 = vmatpush.msra.mxu0 %v264
    %743 = vmatpush.msra.mxu0 %v262
    %744 = vmatpush.msra.mxu0 %v260
    %745 = vmatpush.msra.mxu0 %v258
    %746 = vmatpush.msra.mxu0 %v256
    %747 = vmatpush.msra.mxu0 %v254
    %748 = vmatmul.f32.gmra.mxu0 %v710
    %v749 = vpop.f32.mrf.mxu0
    %v750 = vadd.f32 0.0, %v749
    %751 = vdwg.mxu0
    %v753 = vsel %vm288, %v643, 0
    %755 = vmatpush.msra.mxu0 0.0
    %756 = vmatpush.msra.mxu0 0.0
    %757 = vmatpush.msra.mxu0 0.0
    %758 = vmatpush.msra.mxu0 0.0
    %759 = vmatpush.msra.mxu0 0.0
    %760 = vmatpush.msra.mxu0 0.0
    %761 = vmatpush.msra.mxu0 0.0
    %762 = vmatpush.msra.mxu0 0.0
    %763 = vmatpush.msra.mxu0 %v283
    %764 = vmatpush.msra.mxu0 %v281
    %765 = vmatpush.msra.mxu0 %v279
    %766 = vmatpush.msra.mxu0 %v277
    %767 = vmatpush.msra.mxu0 %v275
    %768 = vmatpush.msra.mxu0 %v273
    %769 = vmatpush.msra.mxu0 %v271
    %770 = vmatpush.msra.mxu0 %v269
    %771 = vmatmul.f32.gmra.mxu0 %v753
    %v772 = vpop.f32.mrf.mxu0
    %v773 = vadd.f32 %v730, %v772
    %774 = vdwg.mxu0
    %775 = vmatpush.msra.mxu0 0.0
    %776 = vmatpush.msra.mxu0 0.0
    %777 = vmatpush.msra.mxu0 0.0
    %778 = vmatpush.msra.mxu0 0.0
    %779 = vmatpush.msra.mxu0 0.0
    %780 = vmatpush.msra.mxu0 0.0
    %781 = vmatpush.msra.mxu0 0.0
    %782 = vmatpush.msra.mxu0 0.0
    %783 = vmatpush.msra.mxu0 %v284
    %784 = vmatpush.msra.mxu0 %v282
    %785 = vmatpush.msra.mxu0 %v280
    %786 = vmatpush.msra.mxu0 %v278
    %787 = vmatpush.msra.mxu0 %v276
    %788 = vmatpush.msra.mxu0 %v274
    %789 = vmatpush.msra.mxu0 %v272
    %790 = vmatpush.msra.mxu0 %v270
    %791 = vmatmul.f32.gmra.mxu0 %v753
    %v792 = vpop.f32.mrf.mxu0
    %v793 = vadd.f32 %v750, %v792
    %794 = vdwg.mxu0
    %v795 = vadd.f32 %v773, %v439
    %v796 = vadd.f32 %v793, %v440
    %v797 = vtanh.pop %v795
    %v798 = vtanh.pop %v796
    %v799 = vmul.f32 %v797, 0.5
    %v800 = vadd.f32 %v799, 0.5
    %v801 = vmul.f32 %v798, 0.5
    %v802 = vadd.f32 %v801, 0.5
    %v803 = vmul.f32 %v800, %v637
    %805 = vrot.lane.b32.xlu0 %v798, 64
    %v806 = vpop.permute.xlu0 %805
    %v808 = vmul.f32 %v800, %v806
    %810 = vrot.lane.b32.xlu0 %v808, 64
    %v811 = vpop.permute.xlu0 %810
    %v813 = vadd.f32 %v803, %v811
    %v814 = vtanh.pop %v813
    %816 = vrot.lane.b32.xlu0 %v814, 64
    %v817 = vpop.permute.xlu0 %816
    %v819 = vmul.f32 %v802, %v817
    %v820 = vld [vmem:[%s190] sm:$0xff]
    %v821 = vld [vmem:[%s190 + $0x8] sm:$0xff]
    %822 = vmatpush.msra.mxu0 0.0
    %823 = vmatpush.msra.mxu0 0.0
    %824 = vmatpush.msra.mxu0 0.0
    %825 = vmatpush.msra.mxu0 0.0
    %826 = vmatpush.msra.mxu0 0.0
    %827 = vmatpush.msra.mxu0 0.0
    %828 = vmatpush.msra.mxu0 0.0
    %829 = vmatpush.msra.mxu0 0.0
    %830 = vmatpush.msra.mxu0 %v251
    %831 = vmatpush.msra.mxu0 %v249
    %832 = vmatpush.msra.mxu0 %v247
    %833 = vmatpush.msra.mxu0 %v245
    %834 = vmatpush.msra.mxu0 %v243
    %835 = vmatpush.msra.mxu0 %v241
    %836 = vmatpush.msra.mxu0 %v239
    %837 = vmatpush.msra.mxu0 %v237
    %838 = vmatmul.f32.gmra.mxu0 %v710
    %v839 = vpop.f32.mrf.mxu0
    %v840 = vadd.f32 %v820, %v839
    %841 = vdwg.mxu0
    %842 = vmatpush.msra.mxu0 0.0
    %843 = vmatpush.msra.mxu0 0.0
    %844 = vmatpush.msra.mxu0 0.0
    %845 = vmatpush.msra.mxu0 0.0
    %846 = vmatpush.msra.mxu0 0.0
    %847 = vmatpush.msra.mxu0 0.0
    %848 = vmatpush.msra.mxu0 0.0
    %849 = vmatpush.msra.mxu0 0.0
    %850 = vmatpush.msra.mxu0 %v252
    %851 = vmatpush.msra.mxu0 %v250
    %852 = vmatpush.msra.mxu0 %v248
    %853 = vmatpush.msra.mxu0 %v246
    %854 = vmatpush.msra.mxu0 %v244
    %855 = vmatpush.msra.mxu0 %v242
    %856 = vmatpush.msra.mxu0 %v240
    %857 = vmatpush.msra.mxu0 %v238
    %858 = vmatmul.f32.gmra.mxu0 %v710
    %v859 = vpop.f32.mrf.mxu0
    %v860 = vadd.f32 %v821, %v859
    %861 = vdwg.mxu0
    %v862 = vtanh.pop %v840
    %v863 = vtanh.pop %v860
    %v864 = vmul.f32 %v862, 0.5
    %v865 = vadd.f32 %v864, 0.5
    %v866 = vmul.f32 %v863, 0.5
    %v867 = vadd.f32 %v866, 0.5
    %v868 = vmul.f32 %v865, %v702
    %870 = vrot.lane.b32.xlu0 %v863, 64
    %v871 = vpop.permute.xlu0 %870
    %v873 = vmul.f32 %v865, %v871
    %875 = vrot.lane.b32.xlu0 %v873, 64
    %v876 = vpop.permute.xlu0 %875
    %v878 = vadd.f32 %v868, %v876
    %v879 = vtanh.pop %v878
    %881 = vrot.lane.b32.xlu0 %v879, 64
    %v882 = vpop.permute.xlu0 %881
    %v884 = vmul.f32 %v867, %v882
    %v886 = vsel %vm288, %v884, 0
    %888 = vmatpush.msra.mxu0 0.0
    %889 = vmatpush.msra.mxu0 0.0
    %890 = vmatpush.msra.mxu0 0.0
    %891 = vmatpush.msra.mxu0 0.0
    %892 = vmatpush.msra.mxu0 0.0
    %893 = vmatpush.msra.mxu0 0.0
    %894 = vmatpush.msra.mxu0 0.0
    %895 = vmatpush.msra.mxu0 0.0
    %896 = vmatpush.msra.mxu0 %v267
    %897 = vmatpush.msra.mxu0 %v265
    %898 = vmatpush.msra.mxu0 %v263
    %899 = vmatpush.msra.mxu0 %v261
    %900 = vmatpush.msra.mxu0 %v259
    %901 = vmatpush.msra.mxu0 %v257
    %902 = vmatpush.msra.mxu0 %v255
    %903 = vmatpush.msra.mxu0 %v253
    %904 = vmatmul.f32.gmra.mxu0 %v886
    %v905 = vpop.f32.mrf.mxu0
    %v906 = vadd.f32 0.0, %v905
    %907 = vdwg.mxu0
    %908 = vmatpush.msra.mxu0 0.0
    %909 = vmatpush.msra.mxu0 0.0
    %910 = vmatpush.msra.mxu0 0.0
    %911 = vmatpush.msra.mxu0 0.0
    %912 = vmatpush.msra.mxu0 0.0
    %913 = vmatpush.msra.mxu0 0.0
    %914 = vmatpush.msra.mxu0 0.0
    %915 = vmatpush.msra.mxu0 0.0
    %916 = vmatpush.msra.mxu0 %v268
    %917 = vmatpush.msra.mxu0 %v266
    %918 = vmatpush.msra.mxu0 %v264
    %919 = vmatpush.msra.mxu0 %v262
    %920 = vmatpush.msra.mxu0 %v260
    %921 = vmatpush.msra.mxu0 %v258
    %922 = vmatpush.msra.mxu0 %v256
    %923 = vmatpush.msra.mxu0 %v254
    %924 = vmatmul.f32.gmra.mxu0 %v886
    %v925 = vpop.f32.mrf.mxu0
    %v926 = vadd.f32 0.0, %v925
    %927 = vdwg.mxu0
    %v929 = vsel %vm288, %v819, 0
    %931 = vmatpush.msra.mxu0 0.0
    %932 = vmatpush.msra.mxu0 0.0
    %933 = vmatpush.msra.mxu0 0.0
    %934 = vmatpush.msra.mxu0 0.0
    %935 = vmatpush.msra.mxu0 0.0
    %936 = vmatpush.msra.mxu0 0.0
    %937 = vmatpush.msra.mxu0 0.0
    %938 = vmatpush.msra.mxu0 0.0
    %939 = vmatpush.msra.mxu0 %v283
    %940 = vmatpush.msra.mxu0 %v281
    %941 = vmatpush.msra.mxu0 %v279
    %942 = vmatpush.msra.mxu0 %v277
    %943 = vmatpush.msra.mxu0 %v275
    %944 = vmatpush.msra.mxu0 %v273
    %945 = vmatpush.msra.mxu0 %v271
    %946 = vmatpush.msra.mxu0 %v269
    %947 = vmatmul.f32.gmra.mxu0 %v929
    %v948 = vpop.f32.mrf.mxu0
    %v949 = vadd.f32 %v906, %v948
    %950 = vdwg.mxu0
    %951 = vmatpush.msra.mxu0 0.0
    %952 = vmatpush.msra.mxu0 0.0
    %953 = vmatpush.msra.mxu0 0.0
    %954 = vmatpush.msra.mxu0 0.0
    %955 = vmatpush.msra.mxu0 0.0
    %956 = vmatpush.msra.mxu0 0.0
    %957 = vmatpush.msra.mxu0 0.0
    %958 = vmatpush.msra.mxu0 0.0
    %959 = vmatpush.msra.mxu0 %v284
    %960 = vmatpush.msra.mxu0 %v282
    %961 = vmatpush.msra.mxu0 %v280
    %962 = vmatpush.msra.mxu0 %v278
    %963 = vmatpush.msra.mxu0 %v276
    %964 = vmatpush.msra.mxu0 %v274
    %965 = vmatpush.msra.mxu0 %v272
    %966 = vmatpush.msra.mxu0 %v270
    %967 = vmatmul.f32.gmra.mxu0 %v929
    %v968 = vpop.f32.mrf.mxu0
    %v969 = vadd.f32 %v926, %v968
    %970 = vdwg.mxu0
    %v971 = vadd.f32 %v949, %v439
    %v972 = vadd.f32 %v969, %v440
    %v973 = vtanh.pop %v971
    %v974 = vtanh.pop %v972
    %v975 = vmul.f32 %v973, 0.5
    %v976 = vadd.f32 %v975, 0.5
    %v977 = vmul.f32 %v974, 0.5
    %v978 = vadd.f32 %v977, 0.5
    %v979 = vmul.f32 %v976, %v813
    %981 = vrot.lane.b32.xlu0 %v974, 64
    %v982 = vpop.permute.xlu0 %981
    %v984 = vmul.f32 %v976, %v982
    %986 = vrot.lane.b32.xlu0 %v984, 64
    %v987 = vpop.permute.xlu0 %986
    %v989 = vadd.f32 %v979, %v987
    %v990 = vtanh.pop %v989
    %992 = vrot.lane.b32.xlu0 %v990, 64
    %v993 = vpop.permute.xlu0 %992
    %v995 = vmul.f32 %v978, %v993
    %v996 = vld [vmem:[%s201] sm:$0xff]
    %v997 = vld [vmem:[%s201 + $0x8] sm:$0xff]
    %998 = vmatpush.msra.mxu0 0.0
    %999 = vmatpush.msra.mxu0 0.0
    %1000 = vmatpush.msra.mxu0 0.0
    %1001 = vmatpush.msra.mxu0 0.0
    %1002 = vmatpush.msra.mxu0 0.0
    %1003 = vmatpush.msra.mxu0 0.0
    %1004 = vmatpush.msra.mxu0 0.0
    %1005 = vmatpush.msra.mxu0 0.0
    %1006 = vmatpush.msra.mxu0 %v251
    %1007 = vmatpush.msra.mxu0 %v249
    %1008 = vmatpush.msra.mxu0 %v247
    %1009 = vmatpush.msra.mxu0 %v245
    %1010 = vmatpush.msra.mxu0 %v243
    %1011 = vmatpush.msra.mxu0 %v241
    %1012 = vmatpush.msra.mxu0 %v239
    %1013 = vmatpush.msra.mxu0 %v237
    %1014 = vmatmul.f32.gmra.mxu0 %v886
    %v1015 = vpop.f32.mrf.mxu0
    %v1016 = vadd.f32 %v996, %v1015
    %1017 = vdwg.mxu0
    %1018 = vmatpush.msra.mxu0 0.0
    %1019 = vmatpush.msra.mxu0 0.0
    %1020 = vmatpush.msra.mxu0 0.0
    %1021 = vmatpush.msra.mxu0 0.0
    %1022 = vmatpush.msra.mxu0 0.0
    %1023 = vmatpush.msra.mxu0 0.0
    %1024 = vmatpush.msra.mxu0 0.0
    %1025 = vmatpush.msra.mxu0 0.0
    %1026 = vmatpush.msra.mxu0 %v252
    %1027 = vmatpush.msra.mxu0 %v250
    %1028 = vmatpush.msra.mxu0 %v248
    %1029 = vmatpush.msra.mxu0 %v246
    %1030 = vmatpush.msra.mxu0 %v244
    %1031 = vmatpush.msra.mxu0 %v242
    %1032 = vmatpush.msra.mxu0 %v240
    %1033 = vmatpush.msra.mxu0 %v238
    %1034 = vmatmul.f32.gmra.mxu0 %v886
    %v1035 = vpop.f32.mrf.mxu0
    %v1036 = vadd.f32 %v997, %v1035
    %1037 = vdwg.mxu0
    %v1038 = vtanh.pop %v1016
    %v1039 = vtanh.pop %v1036
    %v1040 = vmul.f32 %v1038, 0.5
    %v1041 = vadd.f32 %v1040, 0.5
    %v1042 = vmul.f32 %v1039, 0.5
    %v1043 = vadd.f32 %v1042, 0.5
    %v1044 = vmul.f32 %v1041, %v878
    %1046 = vrot.lane.b32.xlu0 %v1039, 64
    %v1047 = vpop.permute.xlu0 %1046
    %v1049 = vmul.f32 %v1041, %v1047
    %1051 = vrot.lane.b32.xlu0 %v1049, 64
    %v1052 = vpop.permute.xlu0 %1051
    %v1054 = vadd.f32 %v1044, %v1052
    %v1055 = vtanh.pop %v1054
    %1057 = vrot.lane.b32.xlu0 %v1055, 64
    %v1058 = vpop.permute.xlu0 %1057
    %v1060 = vmul.f32 %v1043, %v1058
    %v1062 = vsel %vm288, %v1060, 0
    %1064 = vmatpush.msra.mxu0 0.0
    %1065 = vmatpush.msra.mxu0 0.0
    %1066 = vmatpush.msra.mxu0 0.0
    %1067 = vmatpush.msra.mxu0 0.0
    %1068 = vmatpush.msra.mxu0 0.0
    %1069 = vmatpush.msra.mxu0 0.0
    %1070 = vmatpush.msra.mxu0 0.0
    %1071 = vmatpush.msra.mxu0 0.0
    %1072 = vmatpush.msra.mxu0 %v267
    %1073 = vmatpush.msra.mxu0 %v265
    %1074 = vmatpush.msra.mxu0 %v263
    %1075 = vmatpush.msra.mxu0 %v261
    %1076 = vmatpush.msra.mxu0 %v259
    %1077 = vmatpush.msra.mxu0 %v257
    %1078 = vmatpush.msra.mxu0 %v255
    %1079 = vmatpush.msra.mxu0 %v253
    %1080 = vmatmul.f32.gmra.mxu0 %v1062
    %v1081 = vpop.f32.mrf.mxu0
    %v1082 = vadd.f32 0.0, %v1081
    %1083 = vdwg.mxu0
    %1084 = vmatpush.msra.mxu0 0.0
    %1085 = vmatpush.msra.mxu0 0.0
    %1086 = vmatpush.msra.mxu0 0.0
    %1087 = vmatpush.msra.mxu0 0.0
    %1088 = vmatpush.msra.mxu0 0.0
    %1089 = vmatpush.msra.mxu0 0.0
    %1090 = vmatpush.msra.mxu0 0.0
    %1091 = vmatpush.msra.mxu0 0.0
    %1092 = vmatpush.msra.mxu0 %v268
    %1093 = vmatpush.msra.mxu0 %v266
    %1094 = vmatpush.msra.mxu0 %v264
    %1095 = vmatpush.msra.mxu0 %v262
    %1096 = vmatpush.msra.mxu0 %v260
    %1097 = vmatpush.msra.mxu0 %v258
    %1098 = vmatpush.msra.mxu0 %v256
    %1099 = vmatpush.msra.mxu0 %v254
    %1100 = vmatmul.f32.gmra.mxu0 %v1062
    %v1101 = vpop.f32.mrf.mxu0
    %v1102 = vadd.f32 0.0, %v1101
    %1103 = vdwg.mxu0
    %v1105 = vsel %vm288, %v995, 0
    %1107 = vmatpush.msra.mxu0 0.0
    %1108 = vmatpush.msra.mxu0 0.0
    %1109 = vmatpush.msra.mxu0 0.0
    %1110 = vmatpush.msra.mxu0 0.0
    %1111 = vmatpush.msra.mxu0 0.0
    %1112 = vmatpush.msra.mxu0 0.0
    %1113 = vmatpush.msra.mxu0 0.0
    %1114 = vmatpush.msra.mxu0 0.0
    %1115 = vmatpush.msra.mxu0 %v283
    %1116 = vmatpush.msra.mxu0 %v281
    %1117 = vmatpush.msra.mxu0 %v279
    %1118 = vmatpush.msra.mxu0 %v277
    %1119 = vmatpush.msra.mxu0 %v275
    %1120 = vmatpush.msra.mxu0 %v273
    %1121 = vmatpush.msra.mxu0 %v271
    %1122 = vmatpush.msra.mxu0 %v269
    %1123 = vmatmul.f32.gmra.mxu0 %v1105
    %v1124 = vpop.f32.mrf.mxu0
    %v1125 = vadd.f32 %v1082, %v1124
    %1126 = vdwg.mxu0
    %1127 = vmatpush.msra.mxu0 0.0
    %1128 = vmatpush.msra.mxu0 0.0
    %1129 = vmatpush.msra.mxu0 0.0
    %1130 = vmatpush.msra.mxu0 0.0
    %1131 = vmatpush.msra.mxu0 0.0
    %1132 = vmatpush.msra.mxu0 0.0
    %1133 = vmatpush.msra.mxu0 0.0
    %1134 = vmatpush.msra.mxu0 0.0
    %1135 = vmatpush.msra.mxu0 %v284
    %1136 = vmatpush.msra.mxu0 %v282
    %1137 = vmatpush.msra.mxu0 %v280
    %1138 = vmatpush.msra.mxu0 %v278
    %1139 = vmatpush.msra.mxu0 %v276
    %1140 = vmatpush.msra.mxu0 %v274
    %1141 = vmatpush.msra.mxu0 %v272
    %1142 = vmatpush.msra.mxu0 %v270
    %1143 = vmatmul.f32.gmra.mxu0 %v1105
    %v1144 = vpop.f32.mrf.mxu0
    %v1145 = vadd.f32 %v1102, %v1144
    %1146 = vdwg.mxu0
    %v1147 = vadd.f32 %v1125, %v439
    %v1148 = vadd.f32 %v1145, %v440
    %v1149 = vtanh.pop %v1147
    %v1150 = vtanh.pop %v1148
    %v1151 = vmul.f32 %v1149, 0.5
    %v1152 = vadd.f32 %v1151, 0.5
    %v1153 = vmul.f32 %v1150, 0.5
    %v1154 = vadd.f32 %v1153, 0.5
    %v1155 = vmul.f32 %v1152, %v989
    %1157 = vrot.lane.b32.xlu0 %v1150, 64
    %v1158 = vpop.permute.xlu0 %1157
    %v1160 = vmul.f32 %v1152, %v1158
    %1162 = vrot.lane.b32.xlu0 %v1160, 64
    %v1163 = vpop.permute.xlu0 %1162
    %v1165 = vadd.f32 %v1155, %v1163
    %v1166 = vtanh.pop %v1165
    %1168 = vrot.lane.b32.xlu0 %v1166, 64
    %v1169 = vpop.permute.xlu0 %1168
    %v1171 = vmul.f32 %v1154, %v1169
    %v1172 = vld [vmem:[%s212] sm:$0xff]
    %v1173 = vld [vmem:[%s212 + $0x8] sm:$0xff]
    %1174 = vmatpush.msra.mxu0 0.0
    %1175 = vmatpush.msra.mxu0 0.0
    %1176 = vmatpush.msra.mxu0 0.0
    %1177 = vmatpush.msra.mxu0 0.0
    %1178 = vmatpush.msra.mxu0 0.0
    %1179 = vmatpush.msra.mxu0 0.0
    %1180 = vmatpush.msra.mxu0 0.0
    %1181 = vmatpush.msra.mxu0 0.0
    %1182 = vmatpush.msra.mxu0 %v251
    %1183 = vmatpush.msra.mxu0 %v249
    %1184 = vmatpush.msra.mxu0 %v247
    %1185 = vmatpush.msra.mxu0 %v245
    %1186 = vmatpush.msra.mxu0 %v243
    %1187 = vmatpush.msra.mxu0 %v241
    %1188 = vmatpush.msra.mxu0 %v239
    %1189 = vmatpush.msra.mxu0 %v237
    %1190 = vmatmul.f32.gmra.mxu0 %v1062
    %v1191 = vpop.f32.mrf.mxu0
    %v1192 = vadd.f32 %v1172, %v1191
    %1193 = vdwg.mxu0
    %1194 = vmatpush.msra.mxu0 0.0
    %1195 = vmatpush.msra.mxu0 0.0
    %1196 = vmatpush.msra.mxu0 0.0
    %1197 = vmatpush.msra.mxu0 0.0
    %1198 = vmatpush.msra.mxu0 0.0
    %1199 = vmatpush.msra.mxu0 0.0
    %1200 = vmatpush.msra.mxu0 0.0
    %1201 = vmatpush.msra.mxu0 0.0
    %1202 = vmatpush.msra.mxu0 %v252
    %1203 = vmatpush.msra.mxu0 %v250
    %1204 = vmatpush.msra.mxu0 %v248
    %1205 = vmatpush.msra.mxu0 %v246
    %1206 = vmatpush.msra.mxu0 %v244
    %1207 = vmatpush.msra.mxu0 %v242
    %1208 = vmatpush.msra.mxu0 %v240
    %1209 = vmatpush.msra.mxu0 %v238
    %1210 = vmatmul.f32.gmra.mxu0 %v1062
    %v1211 = vpop.f32.mrf.mxu0
    %v1212 = vadd.f32 %v1173, %v1211
    %1213 = vdwg.mxu0
    %v1214 = vtanh.pop %v1192
    %v1215 = vtanh.pop %v1212
    %v1216 = vmul.f32 %v1214, 0.5
    %v1217 = vadd.f32 %v1216, 0.5
    %v1218 = vmul.f32 %v1215, 0.5
    %v1219 = vadd.f32 %v1218, 0.5
    %v1220 = vmul.f32 %v1217, %v1054
    %1222 = vrot.lane.b32.xlu0 %v1215, 64
    %v1223 = vpop.permute.xlu0 %1222
    %v1225 = vmul.f32 %v1217, %v1223
    %1227 = vrot.lane.b32.xlu0 %v1225, 64
    %v1228 = vpop.permute.xlu0 %1227
    %v1230 = vadd.f32 %v1220, %v1228
    %v1231 = vtanh.pop %v1230
    %1233 = vrot.lane.b32.xlu0 %v1231, 64
    %v1234 = vpop.permute.xlu0 %1233
    %v1236 = vmul.f32 %v1219, %v1234
    %v1238 = vsel %vm288, %v1236, 0
    %1240 = vmatpush.msra.mxu0 0.0
    %1241 = vmatpush.msra.mxu0 0.0
    %1242 = vmatpush.msra.mxu0 0.0
    %1243 = vmatpush.msra.mxu0 0.0
    %1244 = vmatpush.msra.mxu0 0.0
    %1245 = vmatpush.msra.mxu0 0.0
    %1246 = vmatpush.msra.mxu0 0.0
    %1247 = vmatpush.msra.mxu0 0.0
    %1248 = vmatpush.msra.mxu0 %v267
    %1249 = vmatpush.msra.mxu0 %v265
    %1250 = vmatpush.msra.mxu0 %v263
    %1251 = vmatpush.msra.mxu0 %v261
    %1252 = vmatpush.msra.mxu0 %v259
    %1253 = vmatpush.msra.mxu0 %v257
    %1254 = vmatpush.msra.mxu0 %v255
    %1255 = vmatpush.msra.mxu0 %v253
    %1256 = vmatmul.f32.gmra.mxu0 %v1238
    %v1257 = vpop.f32.mrf.mxu0
    %v1258 = vadd.f32 0.0, %v1257
    %1259 = vdwg.mxu0
    %1260 = vmatpush.msra.mxu0 0.0
    %1261 = vmatpush.msra.mxu0 0.0
    %1262 = vmatpush.msra.mxu0 0.0
    %1263 = vmatpush.msra.mxu0 0.0
    %1264 = vmatpush.msra.mxu0 0.0
    %1265 = vmatpush.msra.mxu0 0.0
    %1266 = vmatpush.msra.mxu0 0.0
    %1267 = vmatpush.msra.mxu0 0.0
    %1268 = vmatpush.msra.mxu0 %v268
    %1269 = vmatpush.msra.mxu0 %v266
    %1270 = vmatpush.msra.mxu0 %v264
    %1271 = vmatpush.msra.mxu0 %v262
    %1272 = vmatpush.msra.mxu0 %v260
    %1273 = vmatpush.msra.mxu0 %v258
    %1274 = vmatpush.msra.mxu0 %v256
    %1275 = vmatpush.msra.mxu0 %v254
    %1276 = vmatmul.f32.gmra.mxu0 %v1238
    %v1277 = vpop.f32.mrf.mxu0
    %v1278 = vadd.f32 0.0, %v1277
    %1279 = vdwg.mxu0
    %v1281 = vsel %vm288, %v1171, 0
    %1283 = vmatpush.msra.mxu0 0.0
    %1284 = vmatpush.msra.mxu0 0.0
    %1285 = vmatpush.msra.mxu0 0.0
    %1286 = vmatpush.msra.mxu0 0.0
    %1287 = vmatpush.msra.mxu0 0.0
    %1288 = vmatpush.msra.mxu0 0.0
    %1289 = vmatpush.msra.mxu0 0.0
    %1290 = vmatpush.msra.mxu0 0.0
    %1291 = vmatpush.msra.mxu0 %v283
    %1292 = vmatpush.msra.mxu0 %v281
    %1293 = vmatpush.msra.mxu0 %v279
    %1294 = vmatpush.msra.mxu0 %v277
    %1295 = vmatpush.msra.mxu0 %v275
    %1296 = vmatpush.msra.mxu0 %v273
    %1297 = vmatpush.msra.mxu0 %v271
    %1298 = vmatpush.msra.mxu0 %v269
    %1299 = vmatmul.f32.gmra.mxu0 %v1281
    %v1300 = vpop.f32.mrf.mxu0
    %v1301 = vadd.f32 %v1258, %v1300
    %1302 = vdwg.mxu0
    %1303 = vmatpush.msra.mxu0 0.0
    %1304 = vmatpush.msra.mxu0 0.0
    %1305 = vmatpush.msra.mxu0 0.0
    %1306 = vmatpush.msra.mxu0 0.0
    %1307 = vmatpush.msra.mxu0 0.0
    %1308 = vmatpush.msra.mxu0 0.0
    %1309 = vmatpush.msra.mxu0 0.0
    %1310 = vmatpush.msra.mxu0 0.0
    %1311 = vmatpush.msra.mxu0 %v284
    %1312 = vmatpush.msra.mxu0 %v282
    %1313 = vmatpush.msra.mxu0 %v280
    %1314 = vmatpush.msra.mxu0 %v278
    %1315 = vmatpush.msra.mxu0 %v276
    %1316 = vmatpush.msra.mxu0 %v274
    %1317 = vmatpush.msra.mxu0 %v272
    %1318 = vmatpush.msra.mxu0 %v270
    %1319 = vmatmul.f32.gmra.mxu0 %v1281
    %v1320 = vpop.f32.mrf.mxu0
    %v1321 = vadd.f32 %v1278, %v1320
    %1322 = vdwg.mxu0
    %v1323 = vadd.f32 %v1301, %v439
    %v1324 = vadd.f32 %v1321, %v440
    %v1325 = vtanh.pop %v1323
    %v1326 = vtanh.pop %v1324
    %v1327 = vmul.f32 %v1325, 0.5
    %v1328 = vadd.f32 %v1327, 0.5
    %v1329 = vmul.f32 %v1326, 0.5
    %v1330 = vadd.f32 %v1329, 0.5
    %v1331 = vmul.f32 %v1328, %v1165
    %1333 = vrot.lane.b32.xlu0 %v1326, 64
    %v1334 = vpop.permute.xlu0 %1333
    %v1336 = vmul.f32 %v1328, %v1334
    %1338 = vrot.lane.b32.xlu0 %v1336, 64
    %v1339 = vpop.permute.xlu0 %1338
    %v1341 = vadd.f32 %v1331, %v1339
    %v1342 = vtanh.pop %v1341
    %1344 = vrot.lane.b32.xlu0 %v1342, 64
    %v1345 = vpop.permute.xlu0 %1344
    %v1347 = vmul.f32 %v1330, %v1345
    %v1348 = vld [vmem:[%s223] sm:$0xff]
    %v1349 = vld [vmem:[%s223 + $0x8] sm:$0xff]
    %1350 = vmatpush.msra.mxu0 0.0
    %1351 = vmatpush.msra.mxu0 0.0
    %1352 = vmatpush.msra.mxu0 0.0
    %1353 = vmatpush.msra.mxu0 0.0
    %1354 = vmatpush.msra.mxu0 0.0
    %1355 = vmatpush.msra.mxu0 0.0
    %1356 = vmatpush.msra.mxu0 0.0
    %1357 = vmatpush.msra.mxu0 0.0
    %1358 = vmatpush.msra.mxu0 %v251
    %1359 = vmatpush.msra.mxu0 %v249
    %1360 = vmatpush.msra.mxu0 %v247
    %1361 = vmatpush.msra.mxu0 %v245
    %1362 = vmatpush.msra.mxu0 %v243
    %1363 = vmatpush.msra.mxu0 %v241
    %1364 = vmatpush.msra.mxu0 %v239
    %1365 = vmatpush.msra.mxu0 %v237
    %1366 = vmatmul.f32.gmra.mxu0 %v1238
    %v1367 = vpop.f32.mrf.mxu0
    %v1368 = vadd.f32 %v1348, %v1367
    %1369 = vdwg.mxu0
    %1370 = vmatpush.msra.mxu0 0.0
    %1371 = vmatpush.msra.mxu0 0.0
    %1372 = vmatpush.msra.mxu0 0.0
    %1373 = vmatpush.msra.mxu0 0.0
    %1374 = vmatpush.msra.mxu0 0.0
    %1375 = vmatpush.msra.mxu0 0.0
    %1376 = vmatpush.msra.mxu0 0.0
    %1377 = vmatpush.msra.mxu0 0.0
    %1378 = vmatpush.msra.mxu0 %v252
    %1379 = vmatpush.msra.mxu0 %v250
    %1380 = vmatpush.msra.mxu0 %v248
    %1381 = vmatpush.msra.mxu0 %v246
    %1382 = vmatpush.msra.mxu0 %v244
    %1383 = vmatpush.msra.mxu0 %v242
    %1384 = vmatpush.msra.mxu0 %v240
    %1385 = vmatpush.msra.mxu0 %v238
    %1386 = vmatmul.f32.gmra.mxu0 %v1238
    %v1387 = vpop.f32.mrf.mxu0
    %v1388 = vadd.f32 %v1349, %v1387
    %1389 = vdwg.mxu0
    %v1390 = vtanh.pop %v1368
    %v1391 = vtanh.pop %v1388
    %v1392 = vmul.f32 %v1390, 0.5
    %v1393 = vadd.f32 %v1392, 0.5
    %v1394 = vmul.f32 %v1391, 0.5
    %v1395 = vadd.f32 %v1394, 0.5
    %v1396 = vmul.f32 %v1393, %v1230
    %1398 = vrot.lane.b32.xlu0 %v1391, 64
    %v1399 = vpop.permute.xlu0 %1398
    %v1401 = vmul.f32 %v1393, %v1399
    %1403 = vrot.lane.b32.xlu0 %v1401, 64
    %v1404 = vpop.permute.xlu0 %1403
    %v1406 = vadd.f32 %v1396, %v1404
    %v1407 = vtanh.pop %v1406
    %1409 = vrot.lane.b32.xlu0 %v1407, 64
    %v1410 = vpop.permute.xlu0 %1409
    %v1412 = vmul.f32 %v1395, %v1410
    %v1414 = vsel %vm288, %v1412, 0
    %1416 = vmatpush.msra.mxu0 0.0
    %1417 = vmatpush.msra.mxu0 0.0
    %1418 = vmatpush.msra.mxu0 0.0
    %1419 = vmatpush.msra.mxu0 0.0
    %1420 = vmatpush.msra.mxu0 0.0
    %1421 = vmatpush.msra.mxu0 0.0
    %1422 = vmatpush.msra.mxu0 0.0
    %1423 = vmatpush.msra.mxu0 0.0
    %1424 = vmatpush.msra.mxu0 %v267
    %1425 = vmatpush.msra.mxu0 %v265
    %1426 = vmatpush.msra.mxu0 %v263
    %1427 = vmatpush.msra.mxu0 %v261
    %1428 = vmatpush.msra.mxu0 %v259
    %1429 = vmatpush.msra.mxu0 %v257
    %1430 = vmatpush.msra.mxu0 %v255
    %1431 = vmatpush.msra.mxu0 %v253
    %1432 = vmatmul.f32.gmra.mxu0 %v1414
    %v1433 = vpop.f32.mrf.mxu0
    %v1434 = vadd.f32 0.0, %v1433
    %1435 = vdwg.mxu0
    %1436 = vmatpush.msra.mxu0 0.0
    %1437 = vmatpush.msra.mxu0 0.0
    %1438 = vmatpush.msra.mxu0 0.0
    %1439 = vmatpush.msra.mxu0 0.0
    %1440 = vmatpush.msra.mxu0 0.0
    %1441 = vmatpush.msra.mxu0 0.0
    %1442 = vmatpush.msra.mxu0 0.0
    %1443 = vmatpush.msra.mxu0 0.0
    %1444 = vmatpush.msra.mxu0 %v268
    %1445 = vmatpush.msra.mxu0 %v266
    %1446 = vmatpush.msra.mxu0 %v264
    %1447 = vmatpush.msra.mxu0 %v262
    %1448 = vmatpush.msra.mxu0 %v260
    %1449 = vmatpush.msra.mxu0 %v258
    %1450 = vmatpush.msra.mxu0 %v256
    %1451 = vmatpush.msra.mxu0 %v254
    %1452 = vmatmul.f32.gmra.mxu0 %v1414
    %v1453 = vpop.f32.mrf.mxu0
    %v1454 = vadd.f32 0.0, %v1453
    %1455 = vdwg.mxu0
    %v1457 = vsel %vm288, %v1347, 0
    %1459 = vmatpush.msra.mxu0 0.0
    %1460 = vmatpush.msra.mxu0 0.0
    %1461 = vmatpush.msra.mxu0 0.0
    %1462 = vmatpush.msra.mxu0 0.0
    %1463 = vmatpush.msra.mxu0 0.0
    %1464 = vmatpush.msra.mxu0 0.0
    %1465 = vmatpush.msra.mxu0 0.0
    %1466 = vmatpush.msra.mxu0 0.0
    %1467 = vmatpush.msra.mxu0 %v283
    %1468 = vmatpush.msra.mxu0 %v281
    %1469 = vmatpush.msra.mxu0 %v279
    %1470 = vmatpush.msra.mxu0 %v277
    %1471 = vmatpush.msra.mxu0 %v275
    %1472 = vmatpush.msra.mxu0 %v273
    %1473 = vmatpush.msra.mxu0 %v271
    %1474 = vmatpush.msra.mxu0 %v269
    %1475 = vmatmul.f32.gmra.mxu0 %v1457
    %v1476 = vpop.f32.mrf.mxu0
    %v1477 = vadd.f32 %v1434, %v1476
    %1478 = vdwg.mxu0
    %1479 = vmatpush.msra.mxu0 0.0
    %1480 = vmatpush.msra.mxu0 0.0
    %1481 = vmatpush.msra.mxu0 0.0
    %1482 = vmatpush.msra.mxu0 0.0
    %1483 = vmatpush.msra.mxu0 0.0
    %1484 = vmatpush.msra.mxu0 0.0
    %1485 = vmatpush.msra.mxu0 0.0
    %1486 = vmatpush.msra.mxu0 0.0
    %1487 = vmatpush.msra.mxu0 %v284
    %1488 = vmatpush.msra.mxu0 %v282
    %1489 = vmatpush.msra.mxu0 %v280
    %1490 = vmatpush.msra.mxu0 %v278
    %1491 = vmatpush.msra.mxu0 %v276
    %1492 = vmatpush.msra.mxu0 %v274
    %1493 = vmatpush.msra.mxu0 %v272
    %1494 = vmatpush.msra.mxu0 %v270
    %1495 = vmatmul.f32.gmra.mxu0 %v1457
    %v1496 = vpop.f32.mrf.mxu0
    %v1497 = vadd.f32 %v1454, %v1496
    %1498 = vdwg.mxu0
    %v1499 = vadd.f32 %v1477, %v439
    %v1500 = vadd.f32 %v1497, %v440
    %v1501 = vtanh.pop %v1499
    %v1502 = vtanh.pop %v1500
    %v1503 = vmul.f32 %v1501, 0.5
    %v1504 = vadd.f32 %v1503, 0.5
    %v1505 = vmul.f32 %v1502, 0.5
    %v1506 = vadd.f32 %v1505, 0.5
    %v1507 = vmul.f32 %v1504, %v1341
    %1509 = vrot.lane.b32.xlu0 %v1502, 64
    %v1510 = vpop.permute.xlu0 %1509
    %v1512 = vmul.f32 %v1504, %v1510
    %1514 = vrot.lane.b32.xlu0 %v1512, 64
    %v1515 = vpop.permute.xlu0 %1514
    %v1517 = vadd.f32 %v1507, %v1515
    %v1518 = vtanh.pop %v1517
    %1520 = vrot.lane.b32.xlu0 %v1518, 64
    %v1521 = vpop.permute.xlu0 %1520
    %v1523 = vmul.f32 %v1506, %v1521
    %v1524 = vld [vmem:[%s234] sm:$0xff]
    %v1525 = vld [vmem:[%s234 + $0x8] sm:$0xff]
    %1526 = vmatpush.msra.mxu0 0.0
    %1527 = vmatpush.msra.mxu0 0.0
    %1528 = vmatpush.msra.mxu0 0.0
    %1529 = vmatpush.msra.mxu0 0.0
    %1530 = vmatpush.msra.mxu0 0.0
    %1531 = vmatpush.msra.mxu0 0.0
    %1532 = vmatpush.msra.mxu0 0.0
    %1533 = vmatpush.msra.mxu0 0.0
    %1534 = vmatpush.msra.mxu0 %v251
    %1535 = vmatpush.msra.mxu0 %v249
    %1536 = vmatpush.msra.mxu0 %v247
    %1537 = vmatpush.msra.mxu0 %v245
    %1538 = vmatpush.msra.mxu0 %v243
    %1539 = vmatpush.msra.mxu0 %v241
    %1540 = vmatpush.msra.mxu0 %v239
    %1541 = vmatpush.msra.mxu0 %v237
    %1542 = vmatmul.f32.gmra.mxu0 %v1414
    %v1543 = vpop.f32.mrf.mxu0
    %v1544 = vadd.f32 %v1524, %v1543
    %1545 = vdwg.mxu0
    %1546 = vmatpush.msra.mxu0 0.0
    %1547 = vmatpush.msra.mxu0 0.0
    %1548 = vmatpush.msra.mxu0 0.0
    %1549 = vmatpush.msra.mxu0 0.0
    %1550 = vmatpush.msra.mxu0 0.0
    %1551 = vmatpush.msra.mxu0 0.0
    %1552 = vmatpush.msra.mxu0 0.0
    %1553 = vmatpush.msra.mxu0 0.0
    %1554 = vmatpush.msra.mxu0 %v252
    %1555 = vmatpush.msra.mxu0 %v250
    %1556 = vmatpush.msra.mxu0 %v248
    %1557 = vmatpush.msra.mxu0 %v246
    %1558 = vmatpush.msra.mxu0 %v244
    %1559 = vmatpush.msra.mxu0 %v242
    %1560 = vmatpush.msra.mxu0 %v240
    %1561 = vmatpush.msra.mxu0 %v238
    %1562 = vmatmul.f32.gmra.mxu0 %v1414
    %v1563 = vpop.f32.mrf.mxu0
    %v1564 = vadd.f32 %v1525, %v1563
    %1565 = vdwg.mxu0
    %v1566 = vtanh.pop %v1544
    %v1567 = vtanh.pop %v1564
    %v1568 = vmul.f32 %v1566, 0.5
    %v1569 = vadd.f32 %v1568, 0.5
    %v1570 = vmul.f32 %v1567, 0.5
    %v1571 = vadd.f32 %v1570, 0.5
    %v1572 = vmul.f32 %v1569, %v1406
    %1574 = vrot.lane.b32.xlu0 %v1567, 64
    %v1575 = vpop.permute.xlu0 %1574
    %v1577 = vmul.f32 %v1569, %v1575
    %1579 = vrot.lane.b32.xlu0 %v1577, 64
    %v1580 = vpop.permute.xlu0 %1579
    %v1582 = vadd.f32 %v1572, %v1580
    %v1583 = vtanh.pop %v1582
    %1585 = vrot.lane.b32.xlu0 %v1583, 64
    %v1586 = vpop.permute.xlu0 %1585
    %v1588 = vmul.f32 %v1571, %v1586
    %v1590 = vsel %vm288, %v1588, 0
    %1592 = vmatpush.msra.mxu0 0.0
    %1593 = vmatpush.msra.mxu0 0.0
    %1594 = vmatpush.msra.mxu0 0.0
    %1595 = vmatpush.msra.mxu0 0.0
    %1596 = vmatpush.msra.mxu0 0.0
    %1597 = vmatpush.msra.mxu0 0.0
    %1598 = vmatpush.msra.mxu0 0.0
    %1599 = vmatpush.msra.mxu0 0.0
    %1600 = vmatpush.msra.mxu0 %v267
    %1601 = vmatpush.msra.mxu0 %v265
    %1602 = vmatpush.msra.mxu0 %v263
    %1603 = vmatpush.msra.mxu0 %v261
    %1604 = vmatpush.msra.mxu0 %v259
    %1605 = vmatpush.msra.mxu0 %v257
    %1606 = vmatpush.msra.mxu0 %v255
    %1607 = vmatpush.msra.mxu0 %v253
    %1608 = vmatmul.f32.gmra.mxu0 %v1590
    %v1609 = vpop.f32.mrf.mxu0
    %v1610 = vadd.f32 0.0, %v1609
    %1611 = vdwg.mxu0
    %1612 = vmatpush.msra.mxu0 0.0
    %1613 = vmatpush.msra.mxu0 0.0
    %1614 = vmatpush.msra.mxu0 0.0
    %1615 = vmatpush.msra.mxu0 0.0
    %1616 = vmatpush.msra.mxu0 0.0
    %1617 = vmatpush.msra.mxu0 0.0
    %1618 = vmatpush.msra.mxu0 0.0
    %1619 = vmatpush.msra.mxu0 0.0
    %1620 = vmatpush.msra.mxu0 %v268
    %1621 = vmatpush.msra.mxu0 %v266
    %1622 = vmatpush.msra.mxu0 %v264
    %1623 = vmatpush.msra.mxu0 %v262
    %1624 = vmatpush.msra.mxu0 %v260
    %1625 = vmatpush.msra.mxu0 %v258
    %1626 = vmatpush.msra.mxu0 %v256
    %1627 = vmatpush.msra.mxu0 %v254
    %1628 = vmatmul.f32.gmra.mxu0 %v1590
    %v1629 = vpop.f32.mrf.mxu0
    %v1630 = vadd.f32 0.0, %v1629
    %1631 = vdwg.mxu0
    %v1633 = vsel %vm288, %v1523, 0
    %1635 = vmatpush.msra.mxu0 0.0
    %1636 = vmatpush.msra.mxu0 0.0
    %1637 = vmatpush.msra.mxu0 0.0
    %1638 = vmatpush.msra.mxu0 0.0
    %1639 = vmatpush.msra.mxu0 0.0
    %1640 = vmatpush.msra.mxu0 0.0
    %1641 = vmatpush.msra.mxu0 0.0
    %1642 = vmatpush.msra.mxu0 0.0
    %1643 = vmatpush.msra.mxu0 %v283
    %1644 = vmatpush.msra.mxu0 %v281
    %1645 = vmatpush.msra.mxu0 %v279
    %1646 = vmatpush.msra.mxu0 %v277
    %1647 = vmatpush.msra.mxu0 %v275
    %1648 = vmatpush.msra.mxu0 %v273
    %1649 = vmatpush.msra.mxu0 %v271
    %1650 = vmatpush.msra.mxu0 %v269
    %1651 = vmatmul.f32.gmra.mxu0 %v1633
    %v1652 = vpop.f32.mrf.mxu0
    %v1653 = vadd.f32 %v1610, %v1652
    %1654 = vdwg.mxu0
    %1655 = vmatpush.msra.mxu0 0.0
    %1656 = vmatpush.msra.mxu0 0.0
    %1657 = vmatpush.msra.mxu0 0.0
    %1658 = vmatpush.msra.mxu0 0.0
    %1659 = vmatpush.msra.mxu0 0.0
    %1660 = vmatpush.msra.mxu0 0.0
    %1661 = vmatpush.msra.mxu0 0.0
    %1662 = vmatpush.msra.mxu0 0.0
    %1663 = vmatpush.msra.mxu0 %v284
    %1664 = vmatpush.msra.mxu0 %v282
    %1665 = vmatpush.msra.mxu0 %v280
    %1666 = vmatpush.msra.mxu0 %v278
    %1667 = vmatpush.msra.mxu0 %v276
    %1668 = vmatpush.msra.mxu0 %v274
    %1669 = vmatpush.msra.mxu0 %v272
    %1670 = vmatpush.msra.mxu0 %v270
    %1671 = vmatmul.f32.gmra.mxu0 %v1633
    %v1672 = vpop.f32.mrf.mxu0
    %v1673 = vadd.f32 %v1630, %v1672
    %1674 = vdwg.mxu0
    %v1675 = vadd.f32 %v1653, %v439
    %v1676 = vadd.f32 %v1673, %v440
    %v1677 = vtanh.pop %v1675
    %v1678 = vtanh.pop %v1676
    %v1679 = vmul.f32 %v1677, 0.5
    %v1680 = vadd.f32 %v1679, 0.5
    %v1681 = vmul.f32 %v1678, 0.5
    %v1682 = vadd.f32 %v1681, 0.5
    %v1683 = vmul.f32 %v1680, %v1517
    %1685 = vrot.lane.b32.xlu0 %v1678, 64
    %v1686 = vpop.permute.xlu0 %1685
    %v1688 = vmul.f32 %v1680, %v1686
    %1690 = vrot.lane.b32.xlu0 %v1688, 64
    %v1691 = vpop.permute.xlu0 %1690
    %v1693 = vadd.f32 %v1683, %v1691
    %v1694 = vtanh.pop %v1693
    %1696 = vrot.lane.b32.xlu0 %v1694, 64
    %v1697 = vpop.permute.xlu0 %1696
    %v1699 = vmul.f32 %v1682, %v1697
    %v1700 = vld [vmem:[#allocation14] sm:$0xff]
    %v1701 = vld [vmem:[#allocation14 + $0x8] sm:$0xff]
    %v1702 = vld [vmem:[#allocation14 + $0x10] sm:$0xff]
    %v1703 = vld [vmem:[#allocation14 + $0x18] sm:$0xff]
    %v1704 = vld [vmem:[#allocation14 + $0x20] sm:$0xff]
    %v1705 = vld [vmem:[#allocation14 + $0x28] sm:$0xff]
    %v1706 = vld [vmem:[#allocation14 + $0x30] sm:$0xff]
    %v1707 = vld [vmem:[#allocation14 + $0x38] sm:$0xff]
    %v1708 = vld [vmem:[%s8] sm:$0x1]
    %v1710 = vperm.slane %v1708, 0
    %v1713 = vsel %vm288, %v1699, 0
    %1715 = vmatpush.msra.mxu0 0.0
    %1716 = vmatpush.msra.mxu0 0.0
    %1717 = vmatpush.msra.mxu0 0.0
    %1718 = vmatpush.msra.mxu0 0.0
    %1719 = vmatpush.msra.mxu0 0.0
    %1720 = vmatpush.msra.mxu0 0.0
    %1721 = vmatpush.msra.mxu0 0.0
    %1722 = vmatpush.msra.mxu0 0.0
    %1723 = vmatpush.msra.mxu0 %v1707
    %1724 = vmatpush.msra.mxu0 %v1706
    %1725 = vmatpush.msra.mxu0 %v1705
    %1726 = vmatpush.msra.mxu0 %v1704
    %1727 = vmatpush.msra.mxu0 %v1703
    %1728 = vmatpush.msra.mxu0 %v1702
    %1729 = vmatpush.msra.mxu0 %v1701
    %1730 = vmatpush.msra.mxu0 %v1700
    %1731 = vmatmul.f32.gmra.mxu0 %v1713
    %v1732 = vpop.f32.mrf.mxu0
    %v1733 = vadd.f32 %v1710, %v1732
    %1734 = vdwg.mxu0
    %1735 = vst [vmem:[#allocation15] sm:$0xff] %v1733
    // Predicated region
    $region66: #{tpu_custom_call.1} parent=1 // pred_check
      _
    $region67: #{tpu_custom_call.1} parent=1 // pred_check_branch
      %1737 = sbr.rel (0) target = $region69
    $region68: #{tpu_custom_call.1} parent=1 // pred_region
      %1739 = vsyncadd [#allocation5], 0
      %s1741 = sshll.u32 [#allocation15], 4
      %s1742 = int_to_ptr.vmem [resolvable:$true] %s1741
      %s1743 = sshll.u32 %s9, 4
      %s1744 = int_to_ptr.hbm [resolvable:$true] %s1743
      %1746 = dma.vmem_to_hbm [thread:$0]  %s1742, 128, %s1744, [#allocation5]
    $region69: #{tpu_custom_call.1} parent=1 // pred_fallthru
      _
    // Predicated region
    $region70: #{tpu_custom_call.1} parent=1 // pred_check
      _
    $region71: #{tpu_custom_call.1} parent=1 // pred_check_branch
      %1748 = sbr.rel (0) target = $region73
    $region72: #{tpu_custom_call.1} parent=1 // pred_region
      %1750 = dma.done [#allocation5], 128
    $region73: #{tpu_custom_call.1} parent=1 // pred_fallthru
      _
    %1751 = vsyncpa [#allocation4], 1
    %1752 = vsyncpa [#allocation7], 1
    %1753 = vsyncpa [#allocation10], 1
    %1754 = vsyncpa [#allocation13], 1
    %1755 = vsyncpa [#allocation5], 1

</llo_original>
